<compile_context>
chip_gen: v6e
topology: v6e:2x2x1
jax: 0.10.0
libtpu: 0.0.40
codegen_flags: <defaults>
</compile_context>

<pallas_src>
import jax
import jax.numpy as jnp
from jax import lax
from jax.experimental import pallas as pl
from jax.experimental.pallas import tpu as pltpu


# ------------------------- fused batched kernel ------------------------------

def _make_mgnn_kernel(num_clusters, nhid, nfeat, off, fcb_row, ln_eps=1e-5):
    """Fused MGNN forward for one graph (one grid step).

    Refs (per grid step):
      x     (1, N, nfeat)   node features
      adj   (1, N, N)       dense adjacency
      noise (1, L, N, Cmax) packed gumbel noise per pooling level
      p32   (R1, nhid)      packed small params (weights/biases), resident
      fcp   (Rfc, 128)      fc weight+bias padded to a 128-lane slab, resident
      out   (1, N, 128)     lane-dense output slab (cols nout:128 are zero)
    """
    f32 = jnp.float32
    bf16 = jnp.bfloat16

    def bdot(a, b):
        # bf16 operands, f32 accumulation (cuts MXU passes ~3x on v6e/v7x).
        return jnp.dot(a.astype(bf16), b.astype(bf16), preferred_element_type=f32)

    def bdot_t(a, b):
        # a^T @ b with the transpose folded into the contraction (dim0 x dim0).
        # TODO(synk): if a bundle dump shows a vxpose here, build the transposed
        #             one-hot directly instead (first-index vs sublane iota).
        return lax.dot_general(a.astype(bf16), b.astype(bf16),
                               (((0,), (0,)), ((), ())),
                               preferred_element_type=f32)

    def kernel(x_ref, adj_ref, noise_ref, p32_ref, fcp_ref, out_ref):
        x = x_ref[0]
        adj = adj_ref[0]
        adj_bf = adj.astype(bf16)

        # ---- packed parameter slices (static, 8-row-aligned offsets) ----
        gcn_w1 = p32_ref[off["gcn_w1"]:off["gcn_w1"] + nfeat, :]
        gb = off["gcn_bias"]
        gcn_b1 = p32_ref[gb + 0:gb + 1, :]
        ln_g   = p32_ref[gb + 1:gb + 2, :]
        ln_b   = p32_ref[gb + 2:gb + 3, :]
        gcn_b2 = p32_ref[gb + 3:gb + 4, :]
        gcn_w2 = p32_ref[off["gcn_w2"]:off["gcn_w2"] + nhid, :]

        # ---- bottom encoder: 2-layer GCN with layernorm, then outer relu ----
        h = bdot(x, gcn_w1) + gcn_b1
        h = jnp.dot(adj_bf, h.astype(bf16), preferred_element_type=f32)
        mean = jnp.mean(h, axis=-1, keepdims=True)
        var = jnp.mean(jnp.square(h - mean), axis=-1, keepdims=True)
        h = (h - mean) * lax.rsqrt(var + ln_eps)
        h = jnp.maximum(h * ln_g + ln_b, 0.0)
        h = bdot(h, gcn_w2) + gcn_b2
        latent = jnp.maximum(
            jnp.dot(adj_bf, h.astype(bf16), preferred_element_type=f32), 0.0)

        # ---- fc head fused with the "concat" of all_latents:
        #      out = fc_b + sum_seg latent_seg @ fc_w[seg_rows, :]  (128-lane)
        fc_b = fcp_ref[fcb_row:fcb_row + 1, :]
        out = fc_b + bdot(latent, fcp_ref[0:nhid, :])

        dense_adj = adj
        product = None

        for level, c in enumerate(num_clusters):
            o_pw = off[f"pool_w{level}"]
            o_pb = off[f"pool_b{level}"]
            o_ew = off[f"enc_w{level}"]
            o_eb = off[f"enc_b{level}"]
            pw = p32_ref[o_pw:o_pw + nhid, 0:c]
            pb = p32_ref[o_pb:o_pb + 1, 0:c]
            ew = p32_ref[o_ew:o_ew + nhid, :]
            eb = p32_ref[o_eb:o_eb + 1, :]

            rows = latent.shape[0]
            gnoise = noise_ref[0, level, 0:rows, 0:c]

            # pooling logits + hard gumbel-softmax (tau=1): one-hot of argmax
            # (first-max tiebreak), forward value only.
            z = bdot(latent, pw) + pb + gnoise
            m = jnp.max(z, axis=-1, keepdims=True)
            cols = lax.broadcasted_iota(jnp.int32, z.shape, 1)
            first = jnp.min(jnp.where(z == m, cols, c), axis=-1, keepdims=True)
            assign = (cols == first).astype(f32)          # (rows, c) one-hot

            if level == 0:
                product = assign
            else:
                product = bdot(product, assign)

            # xc = F.normalize(assign^T @ latent, dim=1)  -- rsqrt, no divide
            xc = bdot_t(assign, latent)
            ssq = jnp.sum(xc * xc, axis=-1, keepdims=True)
            xc = xc * lax.rsqrt(jnp.maximum(ssq, 1e-24))

            # coarsened adjacency: assign^T @ adj @ assign, global normalize.
            # torch.sum(adj + 1e-8) == sum(adj) + 1e-8 * c*c.
            tmp = bdot_t(assign, dense_adj)
            dense_adj = bdot(tmp, assign)
            total = jnp.sum(dense_adj, keepdims=True) + (1e-8 * c * c)
            dense_adj = dense_adj * pl.reciprocal(total, approx=True)

            # latent = relu(middle_encoder(dense_adj @ xc))
            latent = bdot(dense_adj, xc)
            latent = jnp.maximum(bdot(latent, ew) + eb, 0.0)

            # extended = product @ latent; accumulate its fc contribution.
            extended = bdot(product, latent)
            r0 = (level + 1) * nhid
            out = out + bdot(extended, fcp_ref[r0:r0 + nhid, :])

        out_ref[0] = out   # unmasked 128-lane-dense store

    return kernel


# ------------------------- one-time parameter packing -------------------------

def pack_params(params, num_clusters, nhid, nfeat, nout):
    """Pack all small params into two VMEM-friendly f32 slabs (done once)."""
    L = len(num_clusters)
    assert max(num_clusters) <= nhid and nout <= 128

    def rnd8(v):
        return (v + 7) // 8 * 8

    sections = [("gcn_w1", nfeat), ("gcn_bias", 4), ("gcn_w2", nhid)]
    for l in range(L):
        sections += [(f"pool_w{l}", nhid), (f"pool_b{l}", 1),
                     (f"enc_w{l}", nhid), (f"enc_b{l}", 1)]
    off, cur = {}, 0
    for name, rows in sections:
        off[name] = cur
        cur = rnd8(cur + rows)
    r1 = cur

    def put(buf, r, a):
        a = jnp.asarray(a, jnp.float32)
        if a.ndim == 1:
            a = a.reshape(1, -1)
        return buf.at[r:r + a.shape[0], 0:a.shape[1]].set(a)

    p32 = jnp.zeros((r1, nhid), jnp.float32)
    p32 = put(p32, off["gcn_w1"], params["gcn_w1"])
    gb = off["gcn_bias"]
    p32 = put(p32, gb + 0, params["gcn_b1"])
    p32 = put(p32, gb + 1, params["gcn_ln_g"])
    p32 = put(p32, gb + 2, params["gcn_ln_b"])
    p32 = put(p32, gb + 3, params["gcn_b2"])
    p32 = put(p32, off["gcn_w2"], params["gcn_w2"])
    for l in range(L):
        p32 = put(p32, off[f"pool_w{l}"], params[f"pool_w{l}"])
        p32 = put(p32, off[f"pool_b{l}"], params[f"pool_b{l}"])
        p32 = put(p32, off[f"enc_w{l}"], params[f"enc_w{l}"])
        p32 = put(p32, off[f"enc_b{l}"], params[f"enc_b{l}"])

    fcb_row = (L + 1) * nhid
    rfc = rnd8(fcb_row + 1)
    fcp = jnp.zeros((rfc, 128), jnp.float32)   # fc padded to a 128-lane slab
    fcp = fcp.at[0:fcb_row, 0:nout].set(jnp.asarray(params["fc_w"], jnp.float32))
    fcp = fcp.at[fcb_row, 0:nout].set(jnp.asarray(params["fc_b"], jnp.float32))
    return p32, fcp, off, fcb_row


# ------------------------------ batched forward -------------------------------

def mgnn_forward_batched(p32, fcp, off, fcb_row, x_b, adj_b, noise_b,
                         num_clusters, nhid, nfeat, nout):
    B, N, _ = x_b.shape
    L = len(num_clusters)
    cmax = noise_b.shape[-1]
    r1 = p32.shape[0]
    rfc = fcp.shape[0]

    kernel = _make_mgnn_kernel(tuple(num_clusters), nhid, nfeat, off, fcb_row)

    # Grid over graphs: per-graph blocks for x/adj/noise/out, resident params
    # (constant index_map -> copied in once).  Total VMEM footprint is a few
    # hundred KiB, far under every generation's scoped VMEM limit.
    out = pl.pallas_call(
        kernel,
        out_shape=jax.ShapeDtypeStruct((B, N, 128), jnp.float32),
        grid=(B,),
        in_specs=[
            pl.BlockSpec((1, N, nfeat), lambda b: (b, 0, 0)),
            pl.BlockSpec((1, N, N), lambda b: (b, 0, 0)),
            pl.BlockSpec((1, L, N, cmax), lambda b: (b, 0, 0, 0)),
            pl.BlockSpec((r1, nhid), lambda b: (0, 0)),
            pl.BlockSpec((rfc, 128), lambda b: (0, 0)),
        ],
        out_specs=pl.BlockSpec((1, N, 128), lambda b: (b, 0, 0)),
        compiler_params=pltpu.CompilerParams(
            dimension_semantics=("parallel",)),
    )(x_b, adj_b, noise_b, p32, fcp)
    return out[:, :, :nout]


# ------------------------------ parameter init --------------------------------

def init_params(key, nfeat, nhid, nout, num_clusters):
    params = {}

    def lin(k, fan_in, fan_out):
        k1, k2 = jax.random.split(k)
        w = jax.random.normal(k1, (fan_in, fan_out), jnp.float32) / jnp.sqrt(fan_in)
        b = 0.01 * jax.random.normal(k2, (fan_out,), jnp.float32)
        return w, b

    n_keys = 3 + 2 * len(num_clusters) + 1
    keys = jax.random.split(key, n_keys)
    ki = iter(keys)

    params["gcn_w1"], params["gcn_b1"] = lin(next(ki), nfeat, nhid)
    params["gcn_w2"], params["gcn_b2"] = lin(next(ki), nhid, nhid)
    params["gcn_ln_g"] = jnp.ones((nhid,), jnp.float32)
    params["gcn_ln_b"] = jnp.zeros((nhid,), jnp.float32)
    _ = next(ki)  # consumed for determinism symmetry

    for level, size in enumerate(num_clusters):
        params[f"enc_w{level}"], params[f"enc_b{level}"] = lin(next(ki), nhid, nhid)
        params[f"pool_w{level}"], params[f"pool_b{level}"] = lin(next(ki), nhid, size)

    params["fc_w"], params["fc_b"] = lin(next(ki), (len(num_clusters) + 1) * nhid, nout)
    return params


# ----------------------------------- main --------------------------------------

if __name__ == "__main__":
    B, N, nfeat, nhid, nout = 4, 32, 16, 32, 8
    num_clusters = [10, 5]
    L = len(num_clusters)

    key = jax.random.PRNGKey(0)
    k_x, k_adj, k_p, k_g = jax.random.split(key, 4)

    # Batch of B independent graphs (symmetric dense adjacency with self-loops).
    x_b = jax.random.normal(k_x, (B, N, nfeat), jnp.float32)
    a = (jax.random.uniform(k_adj, (B, N, N)) < 0.2).astype(jnp.float32)
    adj_b = jnp.maximum(a, jnp.swapaxes(a, -1, -2)) + jnp.eye(N, dtype=jnp.float32)

    params = init_params(k_p, nfeat, nhid, nout, num_clusters)
    p32, fcp, off, fcb_row = pack_params(params, num_clusters, nhid, nfeat, nout)

    # Deterministic gumbel noise, packed once into (B, L, N, Cmax).
    sizes_in = [N] + num_clusters[:-1]
    cmax = max(num_clusters)
    noise_b = jnp.zeros((B, L, N, cmax), jnp.float32)
    gkeys = jax.random.split(k_g, B * L)
    for b in range(B):
        for l in range(L):
            rows, c = sizes_in[l], num_clusters[l]
            u = jax.random.uniform(gkeys[b * L + l], (rows, c),
                                   minval=1e-20, maxval=1.0)
            noise_b = noise_b.at[b, l, :rows, :c].set(-jnp.log(-jnp.log(u)))

    out = mgnn_forward_batched(p32, fcp, off, fcb_row, x_b, adj_b, noise_b,
                               num_clusters, nhid, nfeat, nout)
    out = jax.block_until_ready(out)
    assert out.shape == (B, N, nout), out.shape
    assert jnp.all(jnp.isfinite(out))
    print("KERNEL_OK")
</pallas_src>

<mosaic_0001>
module attributes {stable_mosaic.version = 11 : i64} {
  func.func @kernel(%arg0: i32, %arg1: memref<1x32x16xf32, #tpu.memory_space<vmem>>, %arg2: memref<1x32x32xf32, #tpu.memory_space<vmem>>, %arg3: memref<1x2x32x10xf32, #tpu.memory_space<vmem>>, %arg4: memref<216x32xf32, #tpu.memory_space<vmem>>, %arg5: memref<104x128xf32, #tpu.memory_space<vmem>>, %arg6: memref<1x32x128xf32, #tpu.memory_space<vmem>>) attributes {dimension_semantics = [#tpu.dimension_semantics<parallel>], iteration_bounds = array<i64: 4>, scalar_prefetch = 0 : i64, scratch_operands = 0 : i64, tpu.core_type = #tpu.core_type<tc>, window_params = [{transform_indices = @transform_0, window_bounds = array<i64: 1, 32, 16>}, {transform_indices = @transform_1, window_bounds = array<i64: 1, 32, 32>}, {transform_indices = @transform_2, window_bounds = array<i64: 1, 2, 32, 10>}, {pipeline_mode = #tpu.pipeline_mode<synchronous>, transform_indices = @transform_3, window_bounds = array<i64: 216, 32>}, {pipeline_mode = #tpu.pipeline_mode<synchronous>, transform_indices = @transform_4, window_bounds = array<i64: 104, 128>}, {transform_indices = @transform_5, window_bounds = array<i64: 1, 32, 128>}]} {
    %c0 = arith.constant 0 : index
    %c0_0 = arith.constant 0 : index
    %c0_1 = arith.constant 0 : index
    %0 = vector.load %arg1[%c0, %c0_0, %c0_1] : memref<1x32x16xf32, #tpu.memory_space<vmem>>, vector<1x32x16xf32>
    %1 = vector.shape_cast %0 : vector<1x32x16xf32> to vector<32x16xf32>
    %c0_2 = arith.constant 0 : index
    %c0_3 = arith.constant 0 : index
    %c0_4 = arith.constant 0 : index
    %2 = vector.load %arg2[%c0_2, %c0_3, %c0_4] : memref<1x32x32xf32, #tpu.memory_space<vmem>>, vector<1x32x32xf32>
    %3 = vector.shape_cast %2 : vector<1x32x32xf32> to vector<32x32xf32>
    %4 = arith.truncf %3 : vector<32x32xf32> to vector<32x32xbf16>
    %c0_5 = arith.constant 0 : index
    %c0_6 = arith.constant 0 : index
    %5 = vector.load %arg4[%c0_5, %c0_6] : memref<216x32xf32, #tpu.memory_space<vmem>>, vector<16x32xf32>
    %c16 = arith.constant 16 : index
    %c0_7 = arith.constant 0 : index
    %6 = vector.load %arg4[%c16, %c0_7] : memref<216x32xf32, #tpu.memory_space<vmem>>, vector<1x32xf32>
    %c17 = arith.constant 17 : index
    %c0_8 = arith.constant 0 : index
    %7 = vector.load %arg4[%c17, %c0_8] : memref<216x32xf32, #tpu.memory_space<vmem>>, vector<1x32xf32>
    %c18 = arith.constant 18 : index
    %c0_9 = arith.constant 0 : index
    %8 = vector.load %arg4[%c18, %c0_9] : memref<216x32xf32, #tpu.memory_space<vmem>>, vector<1x32xf32>
    %c19 = arith.constant 19 : index
    %c0_10 = arith.constant 0 : index
    %9 = vector.load %arg4[%c19, %c0_10] : memref<216x32xf32, #tpu.memory_space<vmem>>, vector<1x32xf32>
    %c24 = arith.constant 24 : index
    %c0_11 = arith.constant 0 : index
    %10 = vector.load %arg4[%c24, %c0_11] : memref<216x32xf32, #tpu.memory_space<vmem>>, vector<32x32xf32>
    %11 = arith.truncf %1 : vector<32x16xf32> to vector<32x16xbf16>
    %12 = arith.truncf %5 : vector<16x32xf32> to vector<16x32xbf16>
    %cst = arith.constant dense<0.000000e+00> : vector<32x32xf32>
    %13 = tpu.matmul %11, %12, %cst {dimension_numbers = #tpu.dot_dimension_numbers<[1], [0], [0], [1], [0, 0, 1, 1], [], []>} : vector<32x16xbf16>, vector<16x32xbf16>, vector<32x32xf32> -> vector<32x32xf32>
    %14 = vector.broadcast %6 : vector<1x32xf32> to vector<32x32xf32>
    %15 = arith.addf %13, %14 : vector<32x32xf32>
    %16 = arith.truncf %15 : vector<32x32xf32> to vector<32x32xbf16>
    %cst_12 = arith.constant dense<0.000000e+00> : vector<32x32xf32>
    %17 = tpu.matmul %4, %16, %cst_12 {dimension_numbers = #tpu.dot_dimension_numbers<[1], [0], [0], [1], [0, 0, 1, 1], [], []>} : vector<32x32xbf16>, vector<32x32xbf16>, vector<32x32xf32> -> vector<32x32xf32>
    %cst_13 = arith.constant dense<0.000000e+00> : vector<32xf32>
    %18 = vector.multi_reduction <add>, %17, %cst_13 [1] : vector<32x32xf32> to vector<32xf32>
    %19 = vector.shape_cast %18 : vector<32xf32> to vector<32x1xf32>
    %cst_14 = arith.constant 3.200000e+01 : f32
    %20 = vector.broadcast %cst_14 : f32 to vector<32x1xf32>
    %21 = arith.divf %19, %20 : vector<32x1xf32>
    %22 = vector.broadcast %21 : vector<32x1xf32> to vector<32x32xf32>
    %23 = arith.subf %17, %22 : vector<32x32xf32>
    %24 = arith.mulf %23, %23 : vector<32x32xf32>
    %cst_15 = arith.constant dense<0.000000e+00> : vector<32xf32>
    %25 = vector.multi_reduction <add>, %24, %cst_15 [1] : vector<32x32xf32> to vector<32xf32>
    %26 = vector.shape_cast %25 : vector<32xf32> to vector<32x1xf32>
    %cst_16 = arith.constant 3.200000e+01 : f32
    %27 = vector.broadcast %cst_16 : f32 to vector<32x1xf32>
    %28 = arith.divf %26, %27 : vector<32x1xf32>
    %29 = vector.broadcast %21 : vector<32x1xf32> to vector<32x32xf32>
    %30 = arith.subf %17, %29 : vector<32x32xf32>
    %cst_17 = arith.constant 9.99999974E-6 : f32
    %31 = vector.broadcast %cst_17 : f32 to vector<32x1xf32>
    %32 = arith.addf %28, %31 : vector<32x1xf32>
    %33 = math.rsqrt %32 : vector<32x1xf32>
    %34 = vector.broadcast %33 : vector<32x1xf32> to vector<32x32xf32>
    %35 = arith.mulf %30, %34 : vector<32x32xf32>
    %36 = vector.broadcast %7 : vector<1x32xf32> to vector<32x32xf32>
    %37 = arith.mulf %35, %36 : vector<32x32xf32>
    %38 = vector.broadcast %8 : vector<1x32xf32> to vector<32x32xf32>
    %39 = arith.addf %37, %38 : vector<32x32xf32>
    %cst_18 = arith.constant 0.000000e+00 : f32
    %40 = vector.broadcast %cst_18 : f32 to vector<32x32xf32>
    %41 = arith.maximumf %39, %40 : vector<32x32xf32>
    %42 = arith.truncf %41 : vector<32x32xf32> to vector<32x32xbf16>
    %43 = arith.truncf %10 : vector<32x32xf32> to vector<32x32xbf16>
    %cst_19 = arith.constant dense<0.000000e+00> : vector<32x32xf32>
    %44 = tpu.matmul %42, %43, %cst_19 {dimension_numbers = #tpu.dot_dimension_numbers<[1], [0], [0], [1], [0, 0, 1, 1], [], []>} : vector<32x32xbf16>, vector<32x32xbf16>, vector<32x32xf32> -> vector<32x32xf32>
    %45 = vector.broadcast %9 : vector<1x32xf32> to vector<32x32xf32>
    %46 = arith.addf %44, %45 : vector<32x32xf32>
    %47 = arith.truncf %46 : vector<32x32xf32> to vector<32x32xbf16>
    %cst_20 = arith.constant dense<0.000000e+00> : vector<32x32xf32>
    %48 = tpu.matmul %4, %47, %cst_20 {dimension_numbers = #tpu.dot_dimension_numbers<[1], [0], [0], [1], [0, 0, 1, 1], [], []>} : vector<32x32xbf16>, vector<32x32xbf16>, vector<32x32xf32> -> vector<32x32xf32>
    %cst_21 = arith.constant 0.000000e+00 : f32
    %49 = vector.broadcast %cst_21 : f32 to vector<32x32xf32>
    %50 = arith.maximumf %48, %49 : vector<32x32xf32>
    %c96 = arith.constant 96 : index
    %c0_22 = arith.constant 0 : index
    %51 = vector.load %arg5[%c96, %c0_22] : memref<104x128xf32, #tpu.memory_space<vmem>>, vector<1x128xf32>
    %c0_23 = arith.constant 0 : index
    %c0_24 = arith.constant 0 : index
    %52 = vector.load %arg5[%c0_23, %c0_24] : memref<104x128xf32, #tpu.memory_space<vmem>>, vector<32x128xf32>
    %53 = arith.truncf %50 : vector<32x32xf32> to vector<32x32xbf16>
    %54 = arith.truncf %52 : vector<32x128xf32> to vector<32x128xbf16>
    %cst_25 = arith.constant dense<0.000000e+00> : vector<32x128xf32>
    %55 = tpu.matmul %53, %54, %cst_25 {dimension_numbers = #tpu.dot_dimension_numbers<[1], [0], [0], [1], [0, 0, 1, 1], [], []>} : vector<32x32xbf16>, vector<32x128xbf16>, vector<32x128xf32> -> vector<32x128xf32>
    %56 = vector.broadcast %51 : vector<1x128xf32> to vector<32x128xf32>
    %57 = arith.addf %56, %55 : vector<32x128xf32>
    %c56 = arith.constant 56 : index
    %c0_26 = arith.constant 0 : index
    %58 = vector.load %arg4[%c56, %c0_26] : memref<216x32xf32, #tpu.memory_space<vmem>>, vector<32x10xf32>
    %c88 = arith.constant 88 : index
    %c0_27 = arith.constant 0 : index
    %59 = vector.load %arg4[%c88, %c0_27] : memref<216x32xf32, #tpu.memory_space<vmem>>, vector<1x10xf32>
    %c96_28 = arith.constant 96 : index
    %c0_29 = arith.constant 0 : index
    %60 = vector.load %arg4[%c96_28, %c0_29] : memref<216x32xf32, #tpu.memory_space<vmem>>, vector<32x32xf32>
    %c128 = arith.constant 128 : index
    %c0_30 = arith.constant 0 : index
    %61 = vector.load %arg4[%c128, %c0_30] : memref<216x32xf32, #tpu.memory_space<vmem>>, vector<1x32xf32>
    %c0_31 = arith.constant 0 : index
    %c0_32 = arith.constant 0 : index
    %c0_33 = arith.constant 0 : index
    %c0_34 = arith.constant 0 : index
    %62 = vector.load %arg3[%c0_31, %c0_32, %c0_33, %c0_34] : memref<1x2x32x10xf32, #tpu.memory_space<vmem>>, vector<1x1x32x10xf32>
    %63 = vector.shape_cast %62 : vector<1x1x32x10xf32> to vector<32x10xf32>
    %64 = arith.truncf %50 : vector<32x32xf32> to vector<32x32xbf16>
    %65 = arith.truncf %58 : vector<32x10xf32> to vector<32x10xbf16>
    %cst_35 = arith.constant dense<0.000000e+00> : vector<32x10xf32>
    %66 = tpu.matmul %64, %65, %cst_35 {dimension_numbers = #tpu.dot_dimension_numbers<[1], [0], [0], [1], [0, 0, 1, 1], [], []>} : vector<32x32xbf16>, vector<32x10xbf16>, vector<32x10xf32> -> vector<32x10xf32>
    %67 = vector.broadcast %59 : vector<1x10xf32> to vector<32x10xf32>
    %68 = arith.addf %66, %67 : vector<32x10xf32>
    %69 = arith.addf %68, %63 : vector<32x10xf32>
    %cst_36 = arith.constant dense<0xFF800000> : vector<32xf32>
    %70 = vector.multi_reduction <maximumf>, %69, %cst_36 [1] : vector<32x10xf32> to vector<32xf32>
    %71 = vector.shape_cast %70 : vector<32xf32> to vector<32x1xf32>
    %72 = tpu.iota {dimensions = array<i32: 1>} : vector<32x10xi32>
    %73 = vector.broadcast %71 : vector<32x1xf32> to vector<32x10xf32>
    %74 = arith.cmpf oeq, %69, %73 : vector<32x10xf32>
    %c10_i32 = arith.constant 10 : i32
    %75 = vector.broadcast %c10_i32 : i32 to vector<32x10xi32>
    %76 = arith.select %74, %72, %75 : vector<32x10xi1>, vector<32x10xi32>
    %cst_37 = arith.constant dense<2147483647> : vector<32xi32>
    %77 = vector.multi_reduction <minsi>, %76, %cst_37 [1] : vector<32x10xi32> to vector<32xi32>
    %78 = vector.shape_cast %77 : vector<32xi32> to vector<32x1xi32>
    %79 = vector.broadcast %78 : vector<32x1xi32> to vector<32x10xi32>
    %80 = arith.cmpi eq, %72, %79 : vector<32x10xi32>
    %81 = arith.extui %80 : vector<32x10xi1> to vector<32x10xi32>
    %82 = arith.sitofp %81 : vector<32x10xi32> to vector<32x10xf32>
    %83 = arith.truncf %82 : vector<32x10xf32> to vector<32x10xbf16>
    %84 = arith.truncf %50 : vector<32x32xf32> to vector<32x32xbf16>
    %cst_38 = arith.constant dense<0.000000e+00> : vector<10x32xf32>
    %85 = tpu.matmul %83, %84, %cst_38 {dimension_numbers = #tpu.dot_dimension_numbers<[0], [0], [1], [1], [0, 1, 1, 1], [], []>} : vector<32x10xbf16>, vector<32x32xbf16>, vector<10x32xf32> -> vector<10x32xf32>
    %86 = arith.mulf %85, %85 : vector<10x32xf32>
    %cst_39 = arith.constant dense<0.000000e+00> : vector<10xf32>
    %87 = vector.multi_reduction <add>, %86, %cst_39 [1] : vector<10x32xf32> to vector<10xf32>
    %88 = vector.shape_cast %87 : vector<10xf32> to vector<10x1xf32>
    %cst_40 = arith.constant 1.000000e-24 : f32
    %89 = vector.broadcast %cst_40 : f32 to vector<10x1xf32>
    %90 = arith.maximumf %88, %89 : vector<10x1xf32>
    %91 = math.rsqrt %90 : vector<10x1xf32>
    %92 = vector.broadcast %91 : vector<10x1xf32> to vector<10x32xf32>
    %93 = arith.mulf %85, %92 : vector<10x32xf32>
    %94 = arith.truncf %82 : vector<32x10xf32> to vector<32x10xbf16>
    %95 = arith.truncf %3 : vector<32x32xf32> to vector<32x32xbf16>
    %cst_41 = arith.constant dense<0.000000e+00> : vector<10x32xf32>
    %96 = tpu.matmul %94, %95, %cst_41 {dimension_numbers = #tpu.dot_dimension_numbers<[0], [0], [1], [1], [0, 1, 1, 1], [], []>} : vector<32x10xbf16>, vector<32x32xbf16>, vector<10x32xf32> -> vector<10x32xf32>
    %97 = arith.truncf %96 : vector<10x32xf32> to vector<10x32xbf16>
    %98 = arith.truncf %82 : vector<32x10xf32> to vector<32x10xbf16>
    %cst_42 = arith.constant dense<0.000000e+00> : vector<10x10xf32>
    %99 = tpu.matmul %97, %98, %cst_42 {dimension_numbers = #tpu.dot_dimension_numbers<[1], [0], [0], [1], [0, 0, 1, 1], [], []>} : vector<10x32xbf16>, vector<32x10xbf16>, vector<10x10xf32> -> vector<10x10xf32>
    %100 = vector.shape_cast %99 : vector<10x10xf32> to vector<1x10x10xf32>
    %cst_43 = arith.constant dense<0.000000e+00> : vector<1xf32>
    %101 = vector.multi_reduction <add>, %100, %cst_43 [1, 2] : vector<1x10x10xf32> to vector<1xf32>
    %102 = vector.shape_cast %101 : vector<1xf32> to vector<1x1x1xf32>
    %103 = vector.extract %102[0, 0, 0] : f32 from vector<1x1x1xf32>
    %104 = vector.broadcast %103 : f32 to vector<1x1xf32>
    %cst_44 = arith.constant 9.99999997E-7 : f32
    %105 = vector.broadcast %cst_44 : f32 to vector<1x1xf32>
    %106 = arith.addf %104, %105 : vector<1x1xf32>
    %107 = tpu.reciprocal %106 {approx = true} : vector<1x1xf32> -> vector<1x1xf32>
    %108 = vector.broadcast %107 : vector<1x1xf32> to vector<10x10xf32>
    %109 = arith.mulf %99, %108 : vector<10x10xf32>
    %110 = arith.truncf %109 : vector<10x10xf32> to vector<10x10xbf16>
    %111 = arith.truncf %93 : vector<10x32xf32> to vector<10x32xbf16>
    %cst_45 = arith.constant dense<0.000000e+00> : vector<10x32xf32>
    %112 = tpu.matmul %110, %111, %cst_45 {dimension_numbers = #tpu.dot_dimension_numbers<[1], [0], [0], [1], [0, 0, 1, 1], [], []>} : vector<10x10xbf16>, vector<10x32xbf16>, vector<10x32xf32> -> vector<10x32xf32>
    %113 = arith.truncf %112 : vector<10x32xf32> to vector<10x32xbf16>
    %114 = arith.truncf %60 : vector<32x32xf32> to vector<32x32xbf16>
    %cst_46 = arith.constant dense<0.000000e+00> : vector<10x32xf32>
    %115 = tpu.matmul %113, %114, %cst_46 {dimension_numbers = #tpu.dot_dimension_numbers<[1], [0], [0], [1], [0, 0, 1, 1], [], []>} : vector<10x32xbf16>, vector<32x32xbf16>, vector<10x32xf32> -> vector<10x32xf32>
    %116 = vector.broadcast %61 : vector<1x32xf32> to vector<10x32xf32>
    %117 = arith.addf %115, %116 : vector<10x32xf32>
    %cst_47 = arith.constant 0.000000e+00 : f32
    %118 = vector.broadcast %cst_47 : f32 to vector<10x32xf32>
    %119 = arith.maximumf %117, %118 : vector<10x32xf32>
    %120 = arith.truncf %82 : vector<32x10xf32> to vector<32x10xbf16>
    %121 = arith.truncf %119 : vector<10x32xf32> to vector<10x32xbf16>
    %cst_48 = arith.constant dense<0.000000e+00> : vector<32x32xf32>
    %122 = tpu.matmul %120, %121, %cst_48 {dimension_numbers = #tpu.dot_dimension_numbers<[1], [0], [0], [1], [0, 0, 1, 1], [], []>} : vector<32x10xbf16>, vector<10x32xbf16>, vector<32x32xf32> -> vector<32x32xf32>
    %c32 = arith.constant 32 : index
    %c0_49 = arith.constant 0 : index
    %123 = vector.load %arg5[%c32, %c0_49] : memref<104x128xf32, #tpu.memory_space<vmem>>, vector<32x128xf32>
    %124 = arith.truncf %122 : vector<32x32xf32> to vector<32x32xbf16>
    %125 = arith.truncf %123 : vector<32x128xf32> to vector<32x128xbf16>
    %cst_50 = arith.constant dense<0.000000e+00> : vector<32x128xf32>
    %126 = tpu.matmul %124, %125, %cst_50 {dimension_numbers = #tpu.dot_dimension_numbers<[1], [0], [0], [1], [0, 0, 1, 1], [], []>} : vector<32x32xbf16>, vector<32x128xbf16>, vector<32x128xf32> -> vector<32x128xf32>
    %127 = arith.addf %57, %126 : vector<32x128xf32>
    %c136 = arith.constant 136 : index
    %c0_51 = arith.constant 0 : index
    %128 = vector.load %arg4[%c136, %c0_51] : memref<216x32xf32, #tpu.memory_space<vmem>>, vector<32x5xf32>
    %c168 = arith.constant 168 : index
    %c0_52 = arith.constant 0 : index
    %129 = vector.load %arg4[%c168, %c0_52] : memref<216x32xf32, #tpu.memory_space<vmem>>, vector<1x5xf32>
    %c176 = arith.constant 176 : index
    %c0_53 = arith.constant 0 : index
    %130 = vector.load %arg4[%c176, %c0_53] : memref<216x32xf32, #tpu.memory_space<vmem>>, vector<32x32xf32>
    %c208 = arith.constant 208 : index
    %c0_54 = arith.constant 0 : index
    %131 = vector.load %arg4[%c208, %c0_54] : memref<216x32xf32, #tpu.memory_space<vmem>>, vector<1x32xf32>
    %c0_55 = arith.constant 0 : index
    %c1 = arith.constant 1 : index
    %c0_56 = arith.constant 0 : index
    %c0_57 = arith.constant 0 : index
    %132 = vector.load %arg3[%c0_55, %c1, %c0_56, %c0_57] : memref<1x2x32x10xf32, #tpu.memory_space<vmem>>, vector<1x1x10x5xf32>
    %133 = vector.shape_cast %132 : vector<1x1x10x5xf32> to vector<10x5xf32>
    %134 = arith.truncf %119 : vector<10x32xf32> to vector<10x32xbf16>
    %135 = arith.truncf %128 : vector<32x5xf32> to vector<32x5xbf16>
    %cst_58 = arith.constant dense<0.000000e+00> : vector<10x5xf32>
    %136 = tpu.matmul %134, %135, %cst_58 {dimension_numbers = #tpu.dot_dimension_numbers<[1], [0], [0], [1], [0, 0, 1, 1], [], []>} : vector<10x32xbf16>, vector<32x5xbf16>, vector<10x5xf32> -> vector<10x5xf32>
    %137 = vector.broadcast %129 : vector<1x5xf32> to vector<10x5xf32>
    %138 = arith.addf %136, %137 : vector<10x5xf32>
    %139 = arith.addf %138, %133 : vector<10x5xf32>
    %cst_59 = arith.constant dense<0xFF800000> : vector<10xf32>
    %140 = vector.multi_reduction <maximumf>, %139, %cst_59 [1] : vector<10x5xf32> to vector<10xf32>
    %141 = vector.shape_cast %140 : vector<10xf32> to vector<10x1xf32>
    %142 = tpu.iota {dimensions = array<i32: 1>} : vector<10x5xi32>
    %143 = vector.broadcast %141 : vector<10x1xf32> to vector<10x5xf32>
    %144 = arith.cmpf oeq, %139, %143 : vector<10x5xf32>
    %c5_i32 = arith.constant 5 : i32
    %145 = vector.broadcast %c5_i32 : i32 to vector<10x5xi32>
    %146 = arith.select %144, %142, %145 : vector<10x5xi1>, vector<10x5xi32>
    %cst_60 = arith.constant dense<2147483647> : vector<10xi32>
    %147 = vector.multi_reduction <minsi>, %146, %cst_60 [1] : vector<10x5xi32> to vector<10xi32>
    %148 = vector.shape_cast %147 : vector<10xi32> to vector<10x1xi32>
    %149 = vector.broadcast %148 : vector<10x1xi32> to vector<10x5xi32>
    %150 = arith.cmpi eq, %142, %149 : vector<10x5xi32>
    %151 = arith.extui %150 : vector<10x5xi1> to vector<10x5xi32>
    %152 = arith.sitofp %151 : vector<10x5xi32> to vector<10x5xf32>
    %153 = arith.truncf %82 : vector<32x10xf32> to vector<32x10xbf16>
    %154 = arith.truncf %152 : vector<10x5xf32> to vector<10x5xbf16>
    %cst_61 = arith.constant dense<0.000000e+00> : vector<32x5xf32>
    %155 = tpu.matmul %153, %154, %cst_61 {dimension_numbers = #tpu.dot_dimension_numbers<[1], [0], [0], [1], [0, 0, 1, 1], [], []>} : vector<32x10xbf16>, vector<10x5xbf16>, vector<32x5xf32> -> vector<32x5xf32>
    %156 = arith.truncf %152 : vector<10x5xf32> to vector<10x5xbf16>
    %157 = arith.truncf %119 : vector<10x32xf32> to vector<10x32xbf16>
    %cst_62 = arith.constant dense<0.000000e+00> : vector<5x32xf32>
    %158 = tpu.matmul %156, %157, %cst_62 {dimension_numbers = #tpu.dot_dimension_numbers<[0], [0], [1], [1], [0, 1, 1, 1], [], []>} : vector<10x5xbf16>, vector<10x32xbf16>, vector<5x32xf32> -> vector<5x32xf32>
    %159 = arith.mulf %158, %158 : vector<5x32xf32>
    %cst_63 = arith.constant dense<0.000000e+00> : vector<5xf32>
    %160 = vector.multi_reduction <add>, %159, %cst_63 [1] : vector<5x32xf32> to vector<5xf32>
    %161 = vector.shape_cast %160 : vector<5xf32> to vector<5x1xf32>
    %cst_64 = arith.constant 1.000000e-24 : f32
    %162 = vector.broadcast %cst_64 : f32 to vector<5x1xf32>
    %163 = arith.maximumf %161, %162 : vector<5x1xf32>
    %164 = math.rsqrt %163 : vector<5x1xf32>
    %165 = vector.broadcast %164 : vector<5x1xf32> to vector<5x32xf32>
    %166 = arith.mulf %158, %165 : vector<5x32xf32>
    %167 = arith.truncf %152 : vector<10x5xf32> to vector<10x5xbf16>
    %168 = arith.truncf %109 : vector<10x10xf32> to vector<10x10xbf16>
    %cst_65 = arith.constant dense<0.000000e+00> : vector<5x10xf32>
    %169 = tpu.matmul %167, %168, %cst_65 {dimension_numbers = #tpu.dot_dimension_numbers<[0], [0], [1], [1], [0, 1, 1, 1], [], []>} : vector<10x5xbf16>, vector<10x10xbf16>, vector<5x10xf32> -> vector<5x10xf32>
    %170 = arith.truncf %169 : vector<5x10xf32> to vector<5x10xbf16>
    %171 = arith.truncf %152 : vector<10x5xf32> to vector<10x5xbf16>
    %cst_66 = arith.constant dense<0.000000e+00> : vector<5x5xf32>
    %172 = tpu.matmul %170, %171, %cst_66 {dimension_numbers = #tpu.dot_dimension_numbers<[1], [0], [0], [1], [0, 0, 1, 1], [], []>} : vector<5x10xbf16>, vector<10x5xbf16>, vector<5x5xf32> -> vector<5x5xf32>
    %173 = vector.shape_cast %172 : vector<5x5xf32> to vector<1x5x5xf32>
    %cst_67 = arith.constant dense<0.000000e+00> : vector<1xf32>
    %174 = vector.multi_reduction <add>, %173, %cst_67 [1, 2] : vector<1x5x5xf32> to vector<1xf32>
    %175 = vector.shape_cast %174 : vector<1xf32> to vector<1x1x1xf32>
    %176 = vector.extract %175[0, 0, 0] : f32 from vector<1x1x1xf32>
    %177 = vector.broadcast %176 : f32 to vector<1x1xf32>
    %cst_68 = arith.constant 2.500000e-07 : f32
    %178 = vector.broadcast %cst_68 : f32 to vector<1x1xf32>
    %179 = arith.addf %177, %178 : vector<1x1xf32>
    %180 = tpu.reciprocal %179 {approx = true} : vector<1x1xf32> -> vector<1x1xf32>
    %181 = vector.broadcast %180 : vector<1x1xf32> to vector<5x5xf32>
    %182 = arith.mulf %172, %181 : vector<5x5xf32>
    %183 = arith.truncf %182 : vector<5x5xf32> to vector<5x5xbf16>
    %184 = arith.truncf %166 : vector<5x32xf32> to vector<5x32xbf16>
    %cst_69 = arith.constant dense<0.000000e+00> : vector<5x32xf32>
    %185 = tpu.matmul %183, %184, %cst_69 {dimension_numbers = #tpu.dot_dimension_numbers<[1], [0], [0], [1], [0, 0, 1, 1], [], []>} : vector<5x5xbf16>, vector<5x32xbf16>, vector<5x32xf32> -> vector<5x32xf32>
    %186 = arith.truncf %185 : vector<5x32xf32> to vector<5x32xbf16>
    %187 = arith.truncf %130 : vector<32x32xf32> to vector<32x32xbf16>
    %cst_70 = arith.constant dense<0.000000e+00> : vector<5x32xf32>
    %188 = tpu.matmul %186, %187, %cst_70 {dimension_numbers = #tpu.dot_dimension_numbers<[1], [0], [0], [1], [0, 0, 1, 1], [], []>} : vector<5x32xbf16>, vector<32x32xbf16>, vector<5x32xf32> -> vector<5x32xf32>
    %189 = vector.broadcast %131 : vector<1x32xf32> to vector<5x32xf32>
    %190 = arith.addf %188, %189 : vector<5x32xf32>
    %cst_71 = arith.constant 0.000000e+00 : f32
    %191 = vector.broadcast %cst_71 : f32 to vector<5x32xf32>
    %192 = arith.maximumf %190, %191 : vector<5x32xf32>
    %193 = arith.truncf %155 : vector<32x5xf32> to vector<32x5xbf16>
    %194 = arith.truncf %192 : vector<5x32xf32> to vector<5x32xbf16>
    %cst_72 = arith.constant dense<0.000000e+00> : vector<32x32xf32>
    %195 = tpu.matmul %193, %194, %cst_72 {dimension_numbers = #tpu.dot_dimension_numbers<[1], [0], [0], [1], [0, 0, 1, 1], [], []>} : vector<32x5xbf16>, vector<5x32xbf16>, vector<32x32xf32> -> vector<32x32xf32>
    %c64 = arith.constant 64 : index
    %c0_73 = arith.constant 0 : index
    %196 = vector.load %arg5[%c64, %c0_73] : memref<104x128xf32, #tpu.memory_space<vmem>>, vector<32x128xf32>
    %197 = arith.truncf %195 : vector<32x32xf32> to vector<32x32xbf16>
    %198 = arith.truncf %196 : vector<32x128xf32> to vector<32x128xbf16>
    %cst_74 = arith.constant dense<0.000000e+00> : vector<32x128xf32>
    %199 = tpu.matmul %197, %198, %cst_74 {dimension_numbers = #tpu.dot_dimension_numbers<[1], [0], [0], [1], [0, 0, 1, 1], [], []>} : vector<32x32xbf16>, vector<32x128xbf16>, vector<32x128xf32> -> vector<32x128xf32>
    %200 = arith.addf %127, %199 : vector<32x128xf32>
    %c0_75 = arith.constant 0 : index
    %c0_76 = arith.constant 0 : index
    %c0_77 = arith.constant 0 : index
    %201 = vector.load %arg6[%c0_75, %c0_76, %c0_77] : memref<1x32x128xf32, #tpu.memory_space<vmem>>, vector<1x32x128xf32>
    %202 = vector.shape_cast %201 : vector<1x32x128xf32> to vector<32x128xf32>
    %203 = vector.shape_cast %200 : vector<32x128xf32> to vector<1x32x128xf32>
    tpu.vector_store %arg6[%c0_75, %c0_76, %c0_77], %203 {strides = array<i32>} : memref<1x32x128xf32, #tpu.memory_space<vmem>>, vector<1x32x128xf32>,
    return
  }
  func.func @transform_0(%arg0: i32) -> (i32, i32, i32) {
    %c0_i32 = arith.constant 0 : i32
    %c0_i32_0 = arith.constant 0 : i32
    %c0_i32_1 = arith.constant 0 : i32
    return %arg0, %c0_i32, %c0_i32_0 : i32, i32, i32
  }
  func.func @transform_1(%arg0: i32) -> (i32, i32, i32) {
    %c0_i32 = arith.constant 0 : i32
    %c0_i32_0 = arith.constant 0 : i32
    %c0_i32_1 = arith.constant 0 : i32
    return %arg0, %c0_i32, %c0_i32_0 : i32, i32, i32
  }
  func.func @transform_2(%arg0: i32) -> (i32, i32, i32, i32) {
    %c0_i32 = arith.constant 0 : i32
    %c0_i32_0 = arith.constant 0 : i32
    %c0_i32_1 = arith.constant 0 : i32
    %c0_i32_2 = arith.constant 0 : i32
    return %arg0, %c0_i32, %c0_i32_0, %c0_i32_1 : i32, i32, i32, i32
  }
  func.func @transform_3(%arg0: i32) -> (i32, i32) {
    %c0_i32 = arith.constant 0 : i32
    %c0_i32_0 = arith.constant 0 : i32
    %c0_i32_1 = arith.constant 0 : i32
    return %c0_i32, %c0_i32_0 : i32, i32
  }
  func.func @transform_4(%arg0: i32) -> (i32, i32) {
    %c0_i32 = arith.constant 0 : i32
    %c0_i32_0 = arith.constant 0 : i32
    %c0_i32_1 = arith.constant 0 : i32
    return %c0_i32, %c0_i32_0 : i32, i32
  }
  func.func @transform_5(%arg0: i32) -> (i32, i32, i32) {
    %c0_i32 = arith.constant 0 : i32
    %c0_i32_0 = arith.constant 0 : i32
    %c0_i32_1 = arith.constant 0 : i32
    return %arg0, %c0_i32, %c0_i32_0 : i32, i32, i32
  }
}

</mosaic_0001>

<llo_original>
// kernel: tpu_custom_call.1
$region0: #{tpu_custom_call.1}
  #allocation0 [shape = 'u32[]', space=smem, size = 0x4, offset = 0x4, fixed_abs, tag = 'smem constant byte address 0x4 - core index']
  #allocation1 [shape = 'u32[144,128]{1,0:T(1,128)}', space=vmem, size = 0x12000, scoped, tag = 'internal scratch']
  %s0 = inlined_call_operand.vmem [shape: f32[4,32,16], index: 0, kind: input, shape index: {}]
  %s1 = inlined_call_operand.vmem [shape: f32[4,32,32], index: 1, kind: input, shape index: {}]
  %s2 = inlined_call_operand.vmem [shape: f32[4,2,32,10], index: 2, kind: input, shape index: {}]
  %s3 = inlined_call_operand.vmem [shape: f32[216,32], index: 3, kind: input, shape index: {}]
  %s4 = inlined_call_operand.vmem [shape: f32[104,128], index: 4, kind: input, shape index: {}]
  %s5 = inlined_call_operand.hbm [shape: f32[4,32,128], index: 5, kind: output, shape index: {}]
  %s6 = sld [smem:[#allocation0]]
  $region53: #{tpu_custom_call.1} parent=0
    _
  %s8 = ssub.s32 1, %s6
  %s9 = scalar_select 0, %s8, %s6
  $region1: #{tpu_custom_call.1} parent=0
    #allocation2 [shape = 'u8[32768]{0}', space=vmem, size = 0x8000, scoped, tag = 'output window, operand 0']
    #allocation3 [shape = 's32[2]{0}', space=sflag, size = 0x8, scoped, tag = 'scoped memory for tpu_custom_call.1']
    %10 = vsyncpa [#allocation3], 0
    %s11 = scalar_lea.sflag [#allocation3], 1
    %12 = vsyncpa %s11, 0
    loop: start=0, step=1, limit=6
    $region2: #{tpu_custom_call.1} parent=1 // loop_pre_header
      _
    $region3: #{tpu_custom_call.1} parent=1 // loop_header
      %s14 = sphi 0, %s18
      %p15 = scmp.ge.s32.totalorder %s14, 6
      %s24 = sphi 0, %s26
      %s27 = sphi 0, %s24
      %s28 = sphi 0, %s27
      %s44 = sphi 0, %s28
      %s50 = sphi 0, %s52
      %s53 = sphi 0, %s50
      %s54 = sphi 0, %s53
      %s70 = sphi 0, %s54
      %s76 = sphi 0, %s78
      %s79 = sphi 0, %s76
      %s80 = sphi 0, %s79
      %s96 = sphi 0, %s80
      %s100 = sphi 0, %s100
      %s102 = sphi 0, %s100
      %s103 = sphi 0, %s102
      %s117 = sphi 0, %s103
      %s121 = sphi 0, %s121
      %s123 = sphi 0, %s121
      %s124 = sphi 0, %s123
      %s138 = sphi 0, %s124
      %s144 = sphi 0, %s146
      %s147 = sphi 0, %s144
      %s148 = sphi 0, %s147
      %s164 = sphi 0, %s148
    $region4: #{tpu_custom_call.1} parent=1 // loop_header_branch
      %17 = sbr.rel (%p15) target = $region8
    $region5: #{tpu_custom_call.1} parent=1 // loop_body
      %s19 = ssub.s32 %s14, 1
      %s20 = ssub.s32 %s14, 2
      %s21 = sadd.s32 %s14, 1
      %s22 = ssub.s32 %s14, %s21
      %p23 = scmp.eq.s32.totalorder %s22, 0
      %s25 = sadd.s32 %s24, 1
      %s26 = scalar_select %p23, %s24, %s25
      %p29 = pneg %p23
      %p30 = scmp.eq.s32.totalorder %s14, 3
      %p31 = por %p29, %p30
      %p32 = scmp.ne.s32.totalorder %s24, %s27
      %p33 = scmp.eq.s32.totalorder %s14, 0
      %p34 = por %p32, %p33
      %p35 = scmp.ne.s32.totalorder %s24, %s27
      %p36 = scmp.eq.s32.totalorder %s19, 3
      %p37 = por %p35, %p36
      %p38 = scmp.ne.s32.totalorder %s27, %s28
      %p39 = scmp.eq.s32.totalorder %s19, 0
      %p40 = por %p38, %p39
      %p41 = scmp.ne.s32.totalorder %s27, %s28
      %p42 = scmp.eq.s32.totalorder %s20, 3
      %p43 = por %p41, %p42
      %p45 = scmp.ne.s32.totalorder %s28, %s44
      %p46 = scmp.eq.s32.totalorder %s20, 0
      %p47 = por %p45, %p46
      %s48 = ssub.s32 %s14, %s21
      %p49 = scmp.eq.s32.totalorder %s48, 0
      %s51 = sadd.s32 %s50, 1
      %s52 = scalar_select %p49, %s50, %s51
      %p55 = pneg %p49
      %p56 = scmp.eq.s32.totalorder %s14, 3
      %p57 = por %p55, %p56
      %p58 = scmp.ne.s32.totalorder %s50, %s53
      %p59 = scmp.eq.s32.totalorder %s14, 0
      %p60 = por %p58, %p59
      %p61 = scmp.ne.s32.totalorder %s50, %s53
      %p62 = scmp.eq.s32.totalorder %s19, 3
      %p63 = por %p61, %p62
      %p64 = scmp.ne.s32.totalorder %s53, %s54
      %p65 = scmp.eq.s32.totalorder %s19, 0
      %p66 = por %p64, %p65
      %p67 = scmp.ne.s32.totalorder %s53, %s54
      %p68 = scmp.eq.s32.totalorder %s20, 3
      %p69 = por %p67, %p68
      %p71 = scmp.ne.s32.totalorder %s54, %s70
      %p72 = scmp.eq.s32.totalorder %s20, 0
      %p73 = por %p71, %p72
      %s74 = ssub.s32 %s14, %s21
      %p75 = scmp.eq.s32.totalorder %s74, 0
      %s77 = sadd.s32 %s76, 1
      %s78 = scalar_select %p75, %s76, %s77
      %p81 = pneg %p75
      %p82 = scmp.eq.s32.totalorder %s14, 3
      %p83 = por %p81, %p82
      %p84 = scmp.ne.s32.totalorder %s76, %s79
      %p85 = scmp.eq.s32.totalorder %s14, 0
      %p86 = por %p84, %p85
      %p87 = scmp.ne.s32.totalorder %s76, %s79
      %p88 = scmp.eq.s32.totalorder %s19, 3
      %p89 = por %p87, %p88
      %p90 = scmp.ne.s32.totalorder %s79, %s80
      %p91 = scmp.eq.s32.totalorder %s19, 0
      %p92 = por %p90, %p91
      %p93 = scmp.ne.s32.totalorder %s79, %s80
      %p94 = scmp.eq.s32.totalorder %s20, 3
      %p95 = por %p93, %p94
      %p97 = scmp.ne.s32.totalorder %s80, %s96
      %p98 = scmp.eq.s32.totalorder %s20, 0
      %p99 = por %p97, %p98
      %s101 = sadd.s32 %s100, 1
      %p104 = scmp.eq.s32.totalorder %s14, 3
      %p105 = scmp.ne.s32.totalorder %s100, %s102
      %p106 = scmp.eq.s32.totalorder %s14, 0
      %p107 = por %p105, %p106
      %p108 = scmp.ne.s32.totalorder %s100, %s102
      %p109 = scmp.eq.s32.totalorder %s19, 3
      %p110 = por %p108, %p109
      %p111 = scmp.ne.s32.totalorder %s102, %s103
      %p112 = scmp.eq.s32.totalorder %s19, 0
      %p113 = por %p111, %p112
      %p114 = scmp.ne.s32.totalorder %s102, %s103
      %p115 = scmp.eq.s32.totalorder %s20, 3
      %p116 = por %p114, %p115
      %p118 = scmp.ne.s32.totalorder %s103, %s117
      %p119 = scmp.eq.s32.totalorder %s20, 0
      %p120 = por %p118, %p119
      %s122 = sadd.s32 %s121, 1
      %p125 = scmp.eq.s32.totalorder %s14, 3
      %p126 = scmp.ne.s32.totalorder %s121, %s123
      %p127 = scmp.eq.s32.totalorder %s14, 0
      %p128 = por %p126, %p127
      %p129 = scmp.ne.s32.totalorder %s121, %s123
      %p130 = scmp.eq.s32.totalorder %s19, 3
      %p131 = por %p129, %p130
      %p132 = scmp.ne.s32.totalorder %s123, %s124
      %p133 = scmp.eq.s32.totalorder %s19, 0
      %p134 = por %p132, %p133
      %p135 = scmp.ne.s32.totalorder %s123, %s124
      %p136 = scmp.eq.s32.totalorder %s20, 3
      %p137 = por %p135, %p136
      %p139 = scmp.ne.s32.totalorder %s124, %s138
      %p140 = scmp.eq.s32.totalorder %s20, 0
      %p141 = por %p139, %p140
      %s142 = ssub.s32 %s14, %s21
      %p143 = scmp.eq.s32.totalorder %s142, 0
      %s145 = sadd.s32 %s144, 1
      %s146 = scalar_select %p143, %s144, %s145
      %p149 = pneg %p143
      %p150 = scmp.eq.s32.totalorder %s14, 3
      %p151 = por %p149, %p150
      %p152 = scmp.ne.s32.totalorder %s144, %s147
      %p153 = scmp.eq.s32.totalorder %s14, 0
      %p154 = por %p152, %p153
      %p155 = scmp.ne.s32.totalorder %s144, %s147
      %p156 = scmp.eq.s32.totalorder %s19, 3
      %p157 = por %p155, %p156
      %p158 = scmp.ne.s32.totalorder %s147, %s148
      %p159 = scmp.eq.s32.totalorder %s19, 0
      %p160 = por %p158, %p159
      %p161 = scmp.ne.s32.totalorder %s147, %s148
      %p162 = scmp.eq.s32.totalorder %s20, 3
      %p163 = por %p161, %p162
      %p165 = scmp.ne.s32.totalorder %s148, %s164
      %p166 = scmp.eq.s32.totalorder %s20, 0
      %p167 = por %p165, %p166
      %p168 = scmp.le.s32.totalorder 1, %s14
      %p169 = scmp.lt.s32.totalorder %s14, 5
      %p170 = pnand %p168, %p169
      %p171 = pneg %p170
      // Predicated region
      $region9: #{tpu_custom_call.1} parent=5 // pred_check
        _
      $region10: #{tpu_custom_call.1} parent=5 // pred_check_branch
        %173 = sbr.rel (%p170) target = $region12
      $region11: #{tpu_custom_call.1} parent=5 // pred_region
        %s174 = ssub.s32 %s14, 1
        // Predicated region
        $region13: #{tpu_custom_call.1} parent=11 // pred_check
          %p175 = pneg %p113
        $region14: #{tpu_custom_call.1} parent=11 // pred_check_branch
          %177 = sbr.rel (%p175) target = $region16
        $region15: #{tpu_custom_call.1} parent=11 // pred_region
          _
        $region16: #{tpu_custom_call.1} parent=11 // pred_fallthru
          _
        // Predicated region
        $region17: #{tpu_custom_call.1} parent=11 // pred_check
          %p178 = pneg %p134
        $region18: #{tpu_custom_call.1} parent=11 // pred_check_branch
          %180 = sbr.rel (%p178) target = $region20
        $region19: #{tpu_custom_call.1} parent=11 // pred_region
          _
        $region20: #{tpu_custom_call.1} parent=11 // pred_fallthru
          _
      $region12: #{tpu_custom_call.1} parent=5 // pred_fallthru
        _
      %p181 = scmp.lt.s32.totalorder %s14, 4
      // Predicated region
      $region21: #{tpu_custom_call.1} parent=5 // pred_check
        %p182 = pneg %p181
      $region22: #{tpu_custom_call.1} parent=5 // pred_check_branch
        %184 = sbr.rel (%p182) target = $region24
      $region23: #{tpu_custom_call.1} parent=5 // pred_region
        // Predicated region
        $region25: #{tpu_custom_call.1} parent=23 // pred_check
          %p185 = pneg %p34
        $region26: #{tpu_custom_call.1} parent=23 // pred_check_branch
          %187 = sbr.rel (%p185) target = $region28
        $region27: #{tpu_custom_call.1} parent=23 // pred_region
          %p188 = scmp.lt.s32.totalorder %s14, 3
          %s189 = scalar_select %p188, %s14, 3
          %s190 = smul.addr %s189, 4
          %s191 = smul.addr %s190, 8
          %s192 = scalar_lea.vmem %s0, %s191
        $region28: #{tpu_custom_call.1} parent=23 // pred_fallthru
          _
        // Predicated region
        $region29: #{tpu_custom_call.1} parent=23 // pred_check
          %p193 = pneg %p60
        $region30: #{tpu_custom_call.1} parent=23 // pred_check_branch
          %195 = sbr.rel (%p193) target = $region32
        $region31: #{tpu_custom_call.1} parent=23 // pred_region
          %p196 = scmp.lt.s32.totalorder %s14, 3
          %s197 = scalar_select %p196, %s14, 3
          %s198 = smul.addr %s197, 4
          %s199 = smul.addr %s198, 8
          %s200 = scalar_lea.vmem %s1, %s199
        $region32: #{tpu_custom_call.1} parent=23 // pred_fallthru
          _
        // Predicated region
        $region33: #{tpu_custom_call.1} parent=23 // pred_check
          %p201 = pneg %p86
        $region34: #{tpu_custom_call.1} parent=23 // pred_check_branch
          %203 = sbr.rel (%p201) target = $region36
        $region35: #{tpu_custom_call.1} parent=23 // pred_region
          %p204 = scmp.lt.s32.totalorder %s14, 3
          %s205 = scalar_select %p204, %s14, 3
          %s206 = smul.addr %s205, 8
          %s207 = smul.addr %s206, 8
          %s208 = scalar_lea.vmem %s2, %s207
        $region36: #{tpu_custom_call.1} parent=23 // pred_fallthru
          _
      $region24: #{tpu_custom_call.1} parent=5 // pred_fallthru
        _
      %p209 = scmp.le.s32.totalorder 1, %s14
      %p210 = scmp.lt.s32.totalorder %s14, 5
      %p211 = pnand %p209, %p210
      %p212 = pneg %p211
      // Predicated region
      $region37: #{tpu_custom_call.1} parent=5 // pred_check
        _
      $region38: #{tpu_custom_call.1} parent=5 // pred_check_branch
        %214 = sbr.rel (%p211) target = $region40
      $region39: #{tpu_custom_call.1} parent=5 // pred_region
        %s215 = ssub.s32 %s14, 1
        %p216 = scmp.lt.s32.totalorder %s19, 3
        %s217 = scalar_select %p216, %s19, 3
        %s218 = smul.addr %s217, 4
        %s219 = smul.addr %s218, 8
        %s220 = scalar_lea.vmem %s0, %s219
        %p221 = pneg %p40
        %p222 = pneg %p37
        %p223 = scmp.lt.s32.totalorder %s19, 3
        %s224 = scalar_select %p223, %s19, 3
        %s225 = smul.addr %s224, 4
        %s226 = smul.addr %s225, 8
        %s227 = scalar_lea.vmem %s1, %s226
        %p228 = pneg %p66
        %p229 = pneg %p63
        %p230 = scmp.lt.s32.totalorder %s19, 3
        %s231 = scalar_select %p230, %s19, 3
        %s232 = smul.addr %s231, 8
        %s233 = smul.addr %s232, 8
        %s234 = scalar_lea.vmem %s2, %s233
        %p235 = pneg %p92
        %p236 = pneg %p89
        %p237 = pneg %p113
        %p238 = pneg %p110
        %p239 = pneg %p134
        %p240 = pneg %p131
        %p241 = pneg %p160
        %p242 = pneg %p157
        %s243 = sand.u32 %s147, 1
        %s244 = scalar_lea.sflag [#allocation3], %s243
        %s245 = sand.u32 %s147, 1
        %s246 = smul.addr %s245, 32
        %s247 = scalar_lea.vmem [#allocation2], %s246
        %p248 = scmp.lt.s32.totalorder %s19, 3
        %s249 = scalar_select %p248, %s19, 3
        %s250 = smul.addr %s249, 4
        %s251 = smul.addr %s250, 8
        %s252 = scalar_lea.vmem %s0, %s251
        %p253 = scmp.lt.s32.totalorder %s19, 3
        %s254 = scalar_select %p253, %s19, 3
        %s255 = smul.addr %s254, 4
        %s256 = smul.addr %s255, 8
        %s257 = scalar_lea.vmem %s1, %s256
        %p258 = scmp.lt.s32.totalorder %s19, 3
        %s259 = scalar_select %p258, %s19, 3
        %s260 = smul.addr %s259, 8
        %s261 = smul.addr %s260, 8
        %s262 = scalar_lea.vmem %s2, %s261
        %v264 = vld [vmem:[%s252] sm:$0xff]
        %v265 = vld [vmem:[%s252 + $0x8] sm:$0xff]
        %v266 = vld [vmem:[%s252 + $0x10] sm:$0xff]
        %v267 = vld [vmem:[%s252 + $0x18] sm:$0xff]
        %v268 = vld [vmem:[%s257] sm:$0xff]
        %v269 = vld [vmem:[%s257 + $0x8] sm:$0xff]
        %v270 = vld [vmem:[%s257 + $0x10] sm:$0xff]
        %v271 = vld [vmem:[%s257 + $0x18] sm:$0xff]
        %v272 = vpack.c.bf16 %v269, %v268
        %v273 = vpack.c.bf16 %v271, %v270
        %v274 = vld [vmem:[%s3] sm:$0xff]
        %v275 = vld [vmem:[%s3 + $0x8] sm:$0xff]
        %v276 = vld [vmem:[%s3 + $0x10] sm:$0x1]
        %v277 = vld [vmem:[%s3 + $0x11] sm:$0x1]
        %v278 = vld [vmem:[%s3 + $0x12] sm:$0x1]
        %v279 = vld [vmem:[%s3 + $0x13] sm:$0x1]
        %v280 = vld [vmem:[%s3 + $0x18] sm:$0xff]
        %v281 = vld [vmem:[%s3 + $0x20] sm:$0xff]
        %v282 = vld [vmem:[%s3 + $0x28] sm:$0xff]
        %v283 = vld [vmem:[%s3 + $0x30] sm:$0xff]
        %v284 = vpack.c.bf16 %v265, %v264
        %v285 = vpack.c.bf16 %v267, %v266
        %v286 = vpack.c.bf16 %v275, %v274
        %v287 = vlaneseq
        %v288 = vshrl.u32 %v287, 7
        %v289 = vsub.s32 0, %v288
        %v290 = vrot.slane %v276, %v289
        %vm291 = vcmask 130048
        %v293 = vsel %vm291, %v284, 0
        %v296 = vsel %vm291, %v285, 0
        %298 = vmatprep.subr.bf16.mxu0 0
        %299 = vmatpush1.bf16.msra.mxu0 0
        %300 = vmatprep.subr.bf16.mxu0 0
        %301 = vmatpush1.bf16.msra.mxu0 0
        %302 = vmatprep.subr.bf16.mxu0 0
        %303 = vmatpush1.bf16.msra.mxu0 0
        %304 = vmatprep.subr.bf16.mxu0 0
        %305 = vmatpush1.bf16.msra.mxu0 0
        %306 = vmatprep.subr.bf16.mxu0 0
        %307 = vmatpush1.bf16.msra.mxu0 0
        %308 = vmatprep.subr.bf16.mxu0 0
        %309 = vmatpush1.bf16.msra.mxu0 0
        %310 = vmatprep.subr.bf16.mxu0 0
        %311 = vmatpush1.bf16.msra.mxu0 0
        %312 = vmatprep.subr.bf16.mxu0 0
        %313 = vmatpush1.bf16.msra.mxu0 %v286
        %314 = vmatprep.subr.bf16.mxu0 0
        %315 = vmatpush2.bf16.msra.mxu0 0
        %316 = vmatprep.subr.bf16.mxu0 0
        %317 = vmatpush2.bf16.msra.mxu0 0
        %318 = vmatprep.subr.bf16.mxu0 0
        %319 = vmatpush2.bf16.msra.mxu0 0
        %320 = vmatprep.subr.bf16.mxu0 0
        %321 = vmatpush2.bf16.msra.mxu0 0
        %322 = vmatprep.subr.bf16.mxu0 0
        %323 = vmatpush2.bf16.msra.mxu0 0
        %324 = vmatprep.subr.bf16.mxu0 0
        %325 = vmatpush2.bf16.msra.mxu0 0
        %326 = vmatprep.subr.bf16.mxu0 0
        %327 = vmatpush2.bf16.msra.mxu0 0
        %328 = vmatprep.subr.bf16.mxu0 0
        %329 = vmatpush2.bf16.msra.mxu0 0
        %330 = vmatprep.mubr.bf16.mxu0 0
        %331 = vmatmul.mubr.bf16.gmra.mxu0 %v293
        %v332 = vpop.f32.mrf.mxu0
        %v333 = vadd.f32 %v290, %v332
        %v334 = vpop.f32.mrf.mxu0
        %v335 = vpop.f32.mrf.mxu0
        %v336 = vadd.f32 %v290, %v335
        %v337 = vpop.f32.mrf.mxu0
        %338 = vmatprep.mubr.bf16.mxu0 0
        %339 = vmatmul.mubr.bf16.gmra.mxu0 %v296
        %v340 = vpop.f32.mrf.mxu0
        %v341 = vadd.f32 %v290, %v340
        %v342 = vpop.f32.mrf.mxu0
        %v343 = vpop.f32.mrf.mxu0
        %v344 = vadd.f32 %v290, %v343
        %v345 = vpop.f32.mrf.mxu0
        %346 = vdwg.mxu0
        %v347 = vpack.c.bf16 %v336, %v333
        %v348 = vpack.c.bf16 %v344, %v341
        %vm349 = vcmask 261120
        %v351 = vsel %vm349, %v272, 0
        %v354 = vsel %vm349, %v273, 0
        %356 = vmatprep.subr.bf16.mxu0 0
        %357 = vmatpush1.bf16.msra.mxu0 0
        %358 = vmatprep.subr.bf16.mxu0 0
        %359 = vmatpush1.bf16.msra.mxu0 0
        %360 = vmatprep.subr.bf16.mxu0 0
        %361 = vmatpush1.bf16.msra.mxu0 0
        %362 = vmatprep.subr.bf16.mxu0 0
        %363 = vmatpush1.bf16.msra.mxu0 0
        %364 = vmatprep.subr.bf16.mxu0 0
        %365 = vmatpush1.bf16.msra.mxu0 0
        %366 = vmatprep.subr.bf16.mxu0 0
        %367 = vmatpush1.bf16.msra.mxu0 0
        %368 = vmatprep.subr.bf16.mxu0 0
        %369 = vmatpush1.bf16.msra.mxu0 %v348
        %370 = vmatprep.subr.bf16.mxu0 0
        %371 = vmatpush1.bf16.msra.mxu0 %v347
        %372 = vmatprep.subr.bf16.mxu0 0
        %373 = vmatpush2.bf16.msra.mxu0 0
        %374 = vmatprep.subr.bf16.mxu0 0
        %375 = vmatpush2.bf16.msra.mxu0 0
        %376 = vmatprep.subr.bf16.mxu0 0
        %377 = vmatpush2.bf16.msra.mxu0 0
        %378 = vmatprep.subr.bf16.mxu0 0
        %379 = vmatpush2.bf16.msra.mxu0 0
        %380 = vmatprep.subr.bf16.mxu0 0
        %381 = vmatpush2.bf16.msra.mxu0 0
        %382 = vmatprep.subr.bf16.mxu0 0
        %383 = vmatpush2.bf16.msra.mxu0 0
        %384 = vmatprep.subr.bf16.mxu0 0
        %385 = vmatpush2.bf16.msra.mxu0 0
        %386 = vmatprep.subr.bf16.mxu0 0
        %387 = vmatpush2.bf16.msra.mxu0 0
        %388 = vmatprep.mubr.bf16.mxu0 0
        %389 = vmatmul.mubr.bf16.gmra.mxu0 %v351
        %v390 = vpop.f32.mrf.mxu0
        %v391 = vadd.f32 0.0, %v390
        %v392 = vpop.f32.mrf.mxu0
        %v393 = vpop.f32.mrf.mxu0
        %v394 = vadd.f32 0.0, %v393
        %v395 = vpop.f32.mrf.mxu0
        %396 = vmatprep.mubr.bf16.mxu0 0
        %397 = vmatmul.mubr.bf16.gmra.mxu0 %v354
        %v398 = vpop.f32.mrf.mxu0
        %v399 = vadd.f32 0.0, %v398
        %v400 = vpop.f32.mrf.mxu0
        %v401 = vpop.f32.mrf.mxu0
        %v402 = vadd.f32 0.0, %v401
        %v403 = vpop.f32.mrf.mxu0
        %404 = vdwg.mxu0
        %v405 = vsel %vm349, %v391, 0.0
        %406 = vadd.xlane.f32.xlu0 %v405
        %v407 = vpop.xlane.xlu0 %406
        %v408 = vsel %vm349, %v394, 0.0
        %409 = vadd.xlane.f32.xlu0 %v408
        %v410 = vpop.xlane.xlu0 %409
        %v411 = vsel %vm349, %v399, 0.0
        %412 = vadd.xlane.f32.xlu0 %v411
        %v413 = vpop.xlane.xlu0 %412
        %v414 = vsel %vm349, %v402, 0.0
        %415 = vadd.xlane.f32.xlu0 %v414
        %v416 = vpop.xlane.xlu0 %415
        %v417 = vrcp.pop 32.0
        %v418 = vmul.f32 %v407, %v417
        %v419 = vmul.f32 %v410, %v417
        %v420 = vmul.f32 %v413, %v417
        %v421 = vmul.f32 %v416, %v417
        %v422 = vsub.f32 %v391, %v418
        %v423 = vsub.f32 %v394, %v419
        %v424 = vsub.f32 %v399, %v420
        %v425 = vsub.f32 %v402, %v421
        %v426 = vmul.f32 %v422, %v422
        %v427 = vmul.f32 %v423, %v423
        %v428 = vmul.f32 %v424, %v424
        %v429 = vmul.f32 %v425, %v425
        %v430 = vsel %vm349, %v426, 0.0
        %431 = vadd.xlane.f32.xlu0 %v430
        %v432 = vpop.xlane.xlu0 %431
        %v433 = vsel %vm349, %v427, 0.0
        %434 = vadd.xlane.f32.xlu0 %v433
        %v435 = vpop.xlane.xlu0 %434
        %v436 = vsel %vm349, %v428, 0.0
        %437 = vadd.xlane.f32.xlu0 %v436
        %v438 = vpop.xlane.xlu0 %437
        %v439 = vsel %vm349, %v429, 0.0
        %440 = vadd.xlane.f32.xlu0 %v439
        %v441 = vpop.xlane.xlu0 %440
        %v442 = vmul.f32 %v432, %v417
        %v443 = vmul.f32 %v435, %v417
        %v444 = vmul.f32 %v438, %v417
        %v445 = vmul.f32 %v441, %v417
        %v446 = vadd.f32 %v442, 1e-05
        %v447 = vadd.f32 %v443, 1e-05
        %v448 = vadd.f32 %v444, 1e-05
        %v449 = vadd.f32 %v445, 1e-05
        %v450 = vrsqrt.pop %v446
        %v451 = vrsqrt.pop %v447
        %v452 = vrsqrt.pop %v448
        %v453 = vrsqrt.pop %v449
        %v454 = vmul.f32 %v422, %v450
        %v455 = vmul.f32 %v423, %v451
        %v456 = vmul.f32 %v424, %v452
        %v457 = vmul.f32 %v425, %v453
        %v458 = vlaneseq
        %v459 = vshrl.u32 %v458, 7
        %v460 = vsub.s32 0, %v459
        %v461 = vrot.slane %v277, %v460
        %v462 = vmul.f32 %v454, %v461
        %v463 = vmul.f32 %v455, %v461
        %v464 = vmul.f32 %v456, %v461
        %v465 = vmul.f32 %v457, %v461
        %v466 = vlaneseq
        %v467 = vshrl.u32 %v466, 7
        %v468 = vsub.s32 0, %v467
        %v469 = vrot.slane %v278, %v468
        %v470 = vadd.f32 %v462, %v469
        %v471 = vadd.f32 %v463, %v469
        %v472 = vadd.f32 %v464, %v469
        %v473 = vadd.f32 %v465, %v469
        %v474 = vmax.f32 %v470, 0.0
        %v475 = vmax.f32 %v471, 0.0
        %v476 = vmax.f32 %v472, 0.0
        %v477 = vmax.f32 %v473, 0.0
        %v478 = vpack.c.bf16 %v475, %v474
        %v479 = vpack.c.bf16 %v477, %v476
        %v480 = vpack.c.bf16 %v281, %v280
        %v481 = vpack.c.bf16 %v283, %v282
        %v482 = vlaneseq
        %v483 = vshrl.u32 %v482, 7
        %v484 = vsub.s32 0, %v483
        %v485 = vrot.slane %v279, %v484
        %v487 = vsel %vm349, %v478, 0
        %v490 = vsel %vm349, %v479, 0
        %492 = vmatprep.subr.bf16.mxu0 0
        %493 = vmatpush1.bf16.msra.mxu0 0
        %494 = vmatprep.subr.bf16.mxu0 0
        %495 = vmatpush1.bf16.msra.mxu0 0
        %496 = vmatprep.subr.bf16.mxu0 0
        %497 = vmatpush1.bf16.msra.mxu0 0
        %498 = vmatprep.subr.bf16.mxu0 0
        %499 = vmatpush1.bf16.msra.mxu0 0
        %500 = vmatprep.subr.bf16.mxu0 0
        %501 = vmatpush1.bf16.msra.mxu0 0
        %502 = vmatprep.subr.bf16.mxu0 0
        %503 = vmatpush1.bf16.msra.mxu0 0
        %504 = vmatprep.subr.bf16.mxu0 0
        %505 = vmatpush1.bf16.msra.mxu0 %v481
        %506 = vmatprep.subr.bf16.mxu0 0
        %507 = vmatpush1.bf16.msra.mxu0 %v480
        %508 = vmatprep.subr.bf16.mxu0 0
        %509 = vmatpush2.bf16.msra.mxu0 0
        %510 = vmatprep.subr.bf16.mxu0 0
        %511 = vmatpush2.bf16.msra.mxu0 0
        %512 = vmatprep.subr.bf16.mxu0 0
        %513 = vmatpush2.bf16.msra.mxu0 0
        %514 = vmatprep.subr.bf16.mxu0 0
        %515 = vmatpush2.bf16.msra.mxu0 0
        %516 = vmatprep.subr.bf16.mxu0 0
        %517 = vmatpush2.bf16.msra.mxu0 0
        %518 = vmatprep.subr.bf16.mxu0 0
        %519 = vmatpush2.bf16.msra.mxu0 0
        %520 = vmatprep.subr.bf16.mxu0 0
        %521 = vmatpush2.bf16.msra.mxu0 0
        %522 = vmatprep.subr.bf16.mxu0 0
        %523 = vmatpush2.bf16.msra.mxu0 0
        %524 = vmatprep.mubr.bf16.mxu0 0
        %525 = vmatmul.mubr.bf16.gmra.mxu0 %v487
        %v526 = vpop.f32.mrf.mxu0
        %v527 = vadd.f32 %v485, %v526
        %v528 = vpop.f32.mrf.mxu0
        %v529 = vpop.f32.mrf.mxu0
        %v530 = vadd.f32 %v485, %v529
        %v531 = vpop.f32.mrf.mxu0
        %532 = vmatprep.mubr.bf16.mxu0 0
        %533 = vmatmul.mubr.bf16.gmra.mxu0 %v490
        %v534 = vpop.f32.mrf.mxu0
        %v535 = vadd.f32 %v485, %v534
        %v536 = vpop.f32.mrf.mxu0
        %v537 = vpop.f32.mrf.mxu0
        %v538 = vadd.f32 %v485, %v537
        %v539 = vpop.f32.mrf.mxu0
        %540 = vdwg.mxu0
        %v541 = vpack.c.bf16 %v530, %v527
        %v542 = vpack.c.bf16 %v538, %v535
        %543 = vmatprep.subr.bf16.mxu0 0
        %544 = vmatpush1.bf16.msra.mxu0 0
        %545 = vmatprep.subr.bf16.mxu0 0
        %546 = vmatpush1.bf16.msra.mxu0 0
        %547 = vmatprep.subr.bf16.mxu0 0
        %548 = vmatpush1.bf16.msra.mxu0 0
        %549 = vmatprep.subr.bf16.mxu0 0
        %550 = vmatpush1.bf16.msra.mxu0 0
        %551 = vmatprep.subr.bf16.mxu0 0
        %552 = vmatpush1.bf16.msra.mxu0 0
        %553 = vmatprep.subr.bf16.mxu0 0
        %554 = vmatpush1.bf16.msra.mxu0 0
        %555 = vmatprep.subr.bf16.mxu0 0
        %556 = vmatpush1.bf16.msra.mxu0 %v542
        %557 = vmatprep.subr.bf16.mxu0 0
        %558 = vmatpush1.bf16.msra.mxu0 %v541
        %559 = vmatprep.subr.bf16.mxu0 0
        %560 = vmatpush2.bf16.msra.mxu0 0
        %561 = vmatprep.subr.bf16.mxu0 0
        %562 = vmatpush2.bf16.msra.mxu0 0
        %563 = vmatprep.subr.bf16.mxu0 0
        %564 = vmatpush2.bf16.msra.mxu0 0
        %565 = vmatprep.subr.bf16.mxu0 0
        %566 = vmatpush2.bf16.msra.mxu0 0
        %567 = vmatprep.subr.bf16.mxu0 0
        %568 = vmatpush2.bf16.msra.mxu0 0
        %569 = vmatprep.subr.bf16.mxu0 0
        %570 = vmatpush2.bf16.msra.mxu0 0
        %571 = vmatprep.subr.bf16.mxu0 0
        %572 = vmatpush2.bf16.msra.mxu0 0
        %573 = vmatprep.subr.bf16.mxu0 0
        %574 = vmatpush2.bf16.msra.mxu0 0
        %575 = vmatprep.mubr.bf16.mxu0 0
        %576 = vmatmul.mubr.bf16.gmra.mxu0 %v351
        %v577 = vpop.f32.mrf.mxu0
        %v578 = vadd.f32 0.0, %v577
        %v579 = vpop.f32.mrf.mxu0
        %v580 = vpop.f32.mrf.mxu0
        %v581 = vadd.f32 0.0, %v580
        %v582 = vpop.f32.mrf.mxu0
        %583 = vmatprep.mubr.bf16.mxu0 0
        %584 = vmatmul.mubr.bf16.gmra.mxu0 %v354
        %v585 = vpop.f32.mrf.mxu0
        %v586 = vadd.f32 0.0, %v585
        %v587 = vpop.f32.mrf.mxu0
        %v588 = vpop.f32.mrf.mxu0
        %v589 = vadd.f32 0.0, %v588
        %v590 = vpop.f32.mrf.mxu0
        %591 = vdwg.mxu0
        %v592 = vmax.f32 %v578, 0.0
        %v593 = vmax.f32 %v581, 0.0
        %v594 = vmax.f32 %v586, 0.0
        %v595 = vmax.f32 %v589, 0.0
        %v596 = vld [vmem:[%s4 + $0x60] sm:$0x1]
        %v597 = vld [vmem:[%s4] sm:$0xff]
        %v598 = vld [vmem:[%s4 + $0x8] sm:$0xff]
        %v599 = vld [vmem:[%s4 + $0x10] sm:$0xff]
        %v600 = vld [vmem:[%s4 + $0x18] sm:$0xff]
        %v601 = vpack.c.bf16 %v593, %v592
        %v602 = vpack.c.bf16 %v595, %v594
        %v603 = vpack.c.bf16 %v598, %v597
        %v604 = vpack.c.bf16 %v600, %v599
        %v606 = vsel %vm349, %v601, 0
        %v609 = vsel %vm349, %v602, 0
        %611 = vmatprep.subr.bf16.mxu0 0
        %612 = vmatpush1.bf16.msra.mxu0 0
        %613 = vmatprep.subr.bf16.mxu0 0
        %614 = vmatpush1.bf16.msra.mxu0 0
        %615 = vmatprep.subr.bf16.mxu0 0
        %616 = vmatpush1.bf16.msra.mxu0 0
        %617 = vmatprep.subr.bf16.mxu0 0
        %618 = vmatpush1.bf16.msra.mxu0 0
        %619 = vmatprep.subr.bf16.mxu0 0
        %620 = vmatpush1.bf16.msra.mxu0 0
        %621 = vmatprep.subr.bf16.mxu0 0
        %622 = vmatpush1.bf16.msra.mxu0 0
        %623 = vmatprep.subr.bf16.mxu0 0
        %624 = vmatpush1.bf16.msra.mxu0 %v604
        %625 = vmatprep.subr.bf16.mxu0 0
        %626 = vmatpush1.bf16.msra.mxu0 %v603
        %627 = vmatprep.subr.bf16.mxu0 0
        %628 = vmatpush2.bf16.msra.mxu0 0
        %629 = vmatprep.subr.bf16.mxu0 0
        %630 = vmatpush2.bf16.msra.mxu0 0
        %631 = vmatprep.subr.bf16.mxu0 0
        %632 = vmatpush2.bf16.msra.mxu0 0
        %633 = vmatprep.subr.bf16.mxu0 0
        %634 = vmatpush2.bf16.msra.mxu0 0
        %635 = vmatprep.subr.bf16.mxu0 0
        %636 = vmatpush2.bf16.msra.mxu0 0
        %637 = vmatprep.subr.bf16.mxu0 0
        %638 = vmatpush2.bf16.msra.mxu0 0
        %639 = vmatprep.subr.bf16.mxu0 0
        %640 = vmatpush2.bf16.msra.mxu0 0
        %641 = vmatprep.subr.bf16.mxu0 0
        %642 = vmatpush2.bf16.msra.mxu0 0
        %643 = vmatprep.mubr.bf16.mxu0 0
        %644 = vmatmul.mubr.bf16.gmra.mxu0 %v606
        %v645 = vpop.f32.mrf.mxu0
        %v646 = vadd.f32 0.0, %v645
        %v647 = vpop.f32.mrf.mxu0
        %v648 = vpop.f32.mrf.mxu0
        %v649 = vadd.f32 0.0, %v648
        %v650 = vpop.f32.mrf.mxu0
        %651 = vmatprep.mubr.bf16.mxu0 0
        %652 = vmatmul.mubr.bf16.gmra.mxu0 %v609
        %v653 = vpop.f32.mrf.mxu0
        %v654 = vadd.f32 0.0, %v653
        %v655 = vpop.f32.mrf.mxu0
        %v656 = vpop.f32.mrf.mxu0
        %v657 = vadd.f32 0.0, %v656
        %v658 = vpop.f32.mrf.mxu0
        %659 = vdwg.mxu0
        %v660 = vlaneseq
        %v661 = vshrl.u32 %v660, 7
        %v662 = vsub.s32 0, %v661
        %v663 = vrot.slane %v596, %v662
        %v664 = vadd.f32 %v663, %v646
        %v665 = vadd.f32 %v663, %v649
        %v666 = vadd.f32 %v663, %v654
        %v667 = vadd.f32 %v663, %v657
        %v668 = vld [vmem:[%s3 + $0x38] sm:$0xff]
        %v669 = vld [vmem:[%s3 + $0x40] sm:$0xff]
        %v670 = vld [vmem:[%s3 + $0x48] sm:$0xff]
        %v671 = vld [vmem:[%s3 + $0x50] sm:$0xff]
        %v672 = vld [vmem:[%s3 + $0x58] sm:$0x1]
        %v673 = vld [vmem:[%s3 + $0x60] sm:$0xff]
        %v674 = vld [vmem:[%s3 + $0x68] sm:$0xff]
        %v675 = vld [vmem:[%s3 + $0x70] sm:$0xff]
        %v676 = vld [vmem:[%s3 + $0x78] sm:$0xff]
        %v677 = vld [vmem:[%s3 + $0x80] sm:$0x1]
        %v678 = vld [vmem:[%s262] sm:$0xff]
        %v679 = vld [vmem:[%s262 + $0x8] sm:$0xff]
        %v680 = vld [vmem:[%s262 + $0x10] sm:$0xff]
        %v681 = vld [vmem:[%s262 + $0x18] sm:$0xff]
        %v682 = vpack.c.bf16 %v669, %v668
        %v683 = vpack.c.bf16 %v671, %v670
        %v684 = vlaneseq
        %v685 = vshrl.u32 %v684, 7
        %v686 = vsub.s32 0, %v685
        %v687 = vrot.slane %v672, %v686
        %688 = vmatprep.subr.bf16.mxu0 0
        %689 = vmatpush1.bf16.msra.mxu0 0
        %690 = vmatprep.subr.bf16.mxu0 0
        %691 = vmatpush1.bf16.msra.mxu0 0
        %692 = vmatprep.subr.bf16.mxu0 0
        %693 = vmatpush1.bf16.msra.mxu0 0
        %694 = vmatprep.subr.bf16.mxu0 0
        %695 = vmatpush1.bf16.msra.mxu0 0
        %696 = vmatprep.subr.bf16.mxu0 0
        %697 = vmatpush1.bf16.msra.mxu0 0
        %698 = vmatprep.subr.bf16.mxu0 0
        %699 = vmatpush1.bf16.msra.mxu0 0
        %700 = vmatprep.subr.bf16.mxu0 0
        %701 = vmatpush1.bf16.msra.mxu0 %v683
        %702 = vmatprep.subr.bf16.mxu0 0
        %703 = vmatpush1.bf16.msra.mxu0 %v682
        %704 = vmatprep.subr.bf16.mxu0 0
        %705 = vmatpush2.bf16.msra.mxu0 0
        %706 = vmatprep.subr.bf16.mxu0 0
        %707 = vmatpush2.bf16.msra.mxu0 0
        %708 = vmatprep.subr.bf16.mxu0 0
        %709 = vmatpush2.bf16.msra.mxu0 0
        %710 = vmatprep.subr.bf16.mxu0 0
        %711 = vmatpush2.bf16.msra.mxu0 0
        %712 = vmatprep.subr.bf16.mxu0 0
        %713 = vmatpush2.bf16.msra.mxu0 0
        %714 = vmatprep.subr.bf16.mxu0 0
        %715 = vmatpush2.bf16.msra.mxu0 0
        %716 = vmatprep.subr.bf16.mxu0 0
        %717 = vmatpush2.bf16.msra.mxu0 0
        %718 = vmatprep.subr.bf16.mxu0 0
        %719 = vmatpush2.bf16.msra.mxu0 0
        %720 = vmatprep.mubr.bf16.mxu0 0
        %721 = vmatmul.mubr.bf16.gmra.mxu0 %v606
        %v722 = vpop.f32.mrf.mxu0
        %v723 = vadd.f32 %v687, %v722
        %v724 = vpop.f32.mrf.mxu0
        %v725 = vpop.f32.mrf.mxu0
        %v726 = vadd.f32 %v687, %v725
        %v727 = vpop.f32.mrf.mxu0
        %728 = vmatprep.mubr.bf16.mxu0 0
        %729 = vmatmul.mubr.bf16.gmra.mxu0 %v609
        %v730 = vpop.f32.mrf.mxu0
        %v731 = vadd.f32 %v687, %v730
        %v732 = vpop.f32.mrf.mxu0
        %v733 = vpop.f32.mrf.mxu0
        %v734 = vadd.f32 %v687, %v733
        %v735 = vpop.f32.mrf.mxu0
        %736 = vdwg.mxu0
        %v737 = vadd.f32 %v723, %v678
        %v738 = vadd.f32 %v726, %v679
        %v739 = vadd.f32 %v731, %v680
        %v740 = vadd.f32 %v734, %v681
        %vm741 = vcmask 80896
        %v742 = vsel %vm741, %v737, -inf
        %743 = vmax.xlane.f32.xlu0 %v742
        %v744 = vpop.xlane.xlu0 %743
        %v745 = vsel %vm741, %v738, -inf
        %746 = vmax.xlane.f32.xlu0 %v745
        %v747 = vpop.xlane.xlu0 %746
        %v748 = vsel %vm741, %v739, -inf
        %749 = vmax.xlane.f32.xlu0 %v748
        %v750 = vpop.xlane.xlu0 %749
        %v751 = vsel %vm741, %v740, -inf
        %752 = vmax.xlane.f32.xlu0 %v751
        %v753 = vpop.xlane.xlu0 %752
        %v754 = vlaneseq
        %v755 = vand.u32 %v754, 127
        %vm756 = vcmp.eq.f32.partialorder %v737, %v744
        %vm757 = vcmp.eq.f32.partialorder %v738, %v747
        %vm758 = vcmp.eq.f32.partialorder %v739, %v750
        %vm759 = vcmp.eq.f32.partialorder %v740, %v753
        %v760 = vsel %vm756, %v755, 10
        %v761 = vsel %vm757, %v755, 10
        %v762 = vsel %vm758, %v755, 10
        %v763 = vsel %vm759, %v755, 10
        %v764 = vsel %vm741, %v760, 2147483647
        %v765 = vand.u32 %v764, 65535
        %v766 = vshra.s32 %v764, 16
        %v767 = vcvt.s32.f32 %v765
        %v768 = vcvt.s32.f32 %v766
        %769 = vmin.xlane.f32.xlu0 %v768
        %v770 = vpop.xlane.xlu0 %769
        %vm771 = vcmp.eq.f32.partialorder %v768, %v770
        %v772 = vsel %vm771, %v767, inf
        %773 = vmin.xlane.f32.xlu0 %v772
        %v774 = vpop.xlane.xlu0 %773
        %v775 = vcvt.f32.s32 %v774
        %v776 = vcvt.f32.s32 %v770
        %v777 = vshll.u32 %v776, 16
        %v778 = vadd.s32 %v777, %v775
        %v779 = vsel %vm741, %v761, 2147483647
        %v780 = vand.u32 %v779, 65535
        %v781 = vshra.s32 %v779, 16
        %v782 = vcvt.s32.f32 %v780
        %v783 = vcvt.s32.f32 %v781
        %784 = vmin.xlane.f32.xlu0 %v783
        %v785 = vpop.xlane.xlu0 %784
        %vm786 = vcmp.eq.f32.partialorder %v783, %v785
        %v787 = vsel %vm786, %v782, inf
        %788 = vmin.xlane.f32.xlu0 %v787
        %v789 = vpop.xlane.xlu0 %788
        %v790 = vcvt.f32.s32 %v789
        %v791 = vcvt.f32.s32 %v785
        %v792 = vshll.u32 %v791, 16
        %v793 = vadd.s32 %v792, %v790
        %v794 = vsel %vm741, %v762, 2147483647
        %v795 = vand.u32 %v794, 65535
        %v796 = vshra.s32 %v794, 16
        %v797 = vcvt.s32.f32 %v795
        %v798 = vcvt.s32.f32 %v796
        %799 = vmin.xlane.f32.xlu0 %v798
        %v800 = vpop.xlane.xlu0 %799
        %vm801 = vcmp.eq.f32.partialorder %v798, %v800
        %v802 = vsel %vm801, %v797, inf
        %803 = vmin.xlane.f32.xlu0 %v802
        %v804 = vpop.xlane.xlu0 %803
        %v805 = vcvt.f32.s32 %v804
        %v806 = vcvt.f32.s32 %v800
        %v807 = vshll.u32 %v806, 16
        %v808 = vadd.s32 %v807, %v805
        %v809 = vsel %vm741, %v763, 2147483647
        %v810 = vand.u32 %v809, 65535
        %v811 = vshra.s32 %v809, 16
        %v812 = vcvt.s32.f32 %v810
        %v813 = vcvt.s32.f32 %v811
        %814 = vmin.xlane.f32.xlu0 %v813
        %v815 = vpop.xlane.xlu0 %814
        %vm816 = vcmp.eq.f32.partialorder %v813, %v815
        %v817 = vsel %vm816, %v812, inf
        %818 = vmin.xlane.f32.xlu0 %v817
        %v819 = vpop.xlane.xlu0 %818
        %v820 = vcvt.f32.s32 %v819
        %v821 = vcvt.f32.s32 %v815
        %v822 = vshll.u32 %v821, 16
        %v823 = vadd.s32 %v822, %v820
        %vm824 = vcmp.eq.s32.totalorder %v755, %v778
        %vm825 = vcmp.eq.s32.totalorder %v755, %v793
        %vm826 = vcmp.eq.s32.totalorder %v755, %v808
        %vm827 = vcmp.eq.s32.totalorder %v755, %v823
        %v828 = vsel %vm824, 1, 0
        %v829 = vsel %vm825, 1, 0
        %v830 = vsel %vm826, 1, 0
        %v831 = vsel %vm827, 1, 0
        %v832 = vcvt.s32.f32 %v828
        %v833 = vcvt.s32.f32 %v829
        %v834 = vcvt.s32.f32 %v830
        %v835 = vcvt.s32.f32 %v831
        %v836 = vpack.c.bf16 %v833, %v832
        %v837 = vpack.c.bf16 %v835, %v834
        %838 = vxpose.xlu0.c.b16.start [1/8] %v836, 128
        %839 = vxpose.xlu0.c.b16.cont [2/8] %v837, 128
        %840 = vxpose.xlu0.c.b16.cont [3/8] 0, 128
        %841 = vxpose.xlu0.c.b16.cont [4/8] 0, 128
        %842 = vxpose.xlu0.c.b16.cont [5/8] 0, 128
        %843 = vxpose.xlu0.c.b16.cont [6/8] 0, 128
        %844 = vxpose.xlu0.c.b16.cont [7/8] 0, 128
        %845 = vxpose.xlu0.c.b16.end [8/8] 0, 128
        %v846 = vpop.trf.xlu0
        %v847 = vpop.trf.xlu0
        %v848 = vpop.trf.xlu0
        %v849 = vpop.trf.xlu0
        %v850 = vpop.trf.xlu0
        %v851 = vpop.trf.xlu0
        %v852 = vpop.trf.xlu0
        %v853 = vpop.trf.xlu0
        %v855 = vsel %vm349, %v846, 0
        %857 = vmatprep.subr.bf16.mxu0 0
        %858 = vmatpush1.bf16.msra.mxu0 0
        %859 = vmatprep.subr.bf16.mxu0 0
        %860 = vmatpush1.bf16.msra.mxu0 0
        %861 = vmatprep.subr.bf16.mxu0 0
        %862 = vmatpush1.bf16.msra.mxu0 0
        %863 = vmatprep.subr.bf16.mxu0 0
        %864 = vmatpush1.bf16.msra.mxu0 0
        %865 = vmatprep.subr.bf16.mxu0 0
        %866 = vmatpush1.bf16.msra.mxu0 0
        %867 = vmatprep.subr.bf16.mxu0 0
        %868 = vmatpush1.bf16.msra.mxu0 0
        %869 = vmatprep.subr.bf16.mxu0 0
        %870 = vmatpush1.bf16.msra.mxu0 %v602
        %871 = vmatprep.subr.bf16.mxu0 0
        %872 = vmatpush1.bf16.msra.mxu0 %v601
        %873 = vmatprep.subr.bf16.mxu0 0
        %874 = vmatpush2.bf16.msra.mxu0 0
        %875 = vmatprep.subr.bf16.mxu0 0
        %876 = vmatpush2.bf16.msra.mxu0 0
        %877 = vmatprep.subr.bf16.mxu0 0
        %878 = vmatpush2.bf16.msra.mxu0 0
        %879 = vmatprep.subr.bf16.mxu0 0
        %880 = vmatpush2.bf16.msra.mxu0 0
        %881 = vmatprep.subr.bf16.mxu0 0
        %882 = vmatpush2.bf16.msra.mxu0 0
        %883 = vmatprep.subr.bf16.mxu0 0
        %884 = vmatpush2.bf16.msra.mxu0 0
        %885 = vmatprep.subr.bf16.mxu0 0
        %886 = vmatpush2.bf16.msra.mxu0 0
        %887 = vmatprep.subr.bf16.mxu0 0
        %888 = vmatpush2.bf16.msra.mxu0 0
        %889 = vmatprep.mubr.bf16.mxu0 0
        %890 = vmatmul.mubr.bf16.gmra.mxu0 %v855
        %v891 = vpop.f32.mrf.mxu0
        %v892 = vadd.f32 0.0, %v891
        %v893 = vpop.f32.mrf.mxu0
        %v894 = vpop.f32.mrf.mxu0
        %v895 = vadd.f32 0.0, %v894
        %v896 = vpop.f32.mrf.mxu0
        %897 = vdwg.mxu0
        %v898 = vmul.f32 %v892, %v892
        %v899 = vmul.f32 %v895, %v895
        %v900 = vsel %vm349, %v898, 0.0
        %901 = vadd.xlane.f32.xlu0 %v900
        %v902 = vpop.xlane.xlu0 %901
        %vm903 = vcmask 254976
        %v904 = vsel %vm903, %v899, 0.0
        %905 = vadd.xlane.f32.xlu0 %v904
        %v906 = vpop.xlane.xlu0 %905
        %v907 = vmax.f32 %v902, 1e-24
        %v908 = vmax.f32 %v906, 1e-24
        %v909 = vrsqrt.pop %v907
        %v910 = vrsqrt.pop %v908
        %v911 = vmul.f32 %v892, %v909
        %v912 = vmul.f32 %v895, %v910
        %913 = vmatprep.subr.bf16.mxu0 0
        %914 = vmatpush1.bf16.msra.mxu0 0
        %915 = vmatprep.subr.bf16.mxu0 0
        %916 = vmatpush1.bf16.msra.mxu0 0
        %917 = vmatprep.subr.bf16.mxu0 0
        %918 = vmatpush1.bf16.msra.mxu0 0
        %919 = vmatprep.subr.bf16.mxu0 0
        %920 = vmatpush1.bf16.msra.mxu0 0
        %921 = vmatprep.subr.bf16.mxu0 0
        %922 = vmatpush1.bf16.msra.mxu0 0
        %923 = vmatprep.subr.bf16.mxu0 0
        %924 = vmatpush1.bf16.msra.mxu0 0
        %925 = vmatprep.subr.bf16.mxu0 0
        %926 = vmatpush1.bf16.msra.mxu0 %v273
        %927 = vmatprep.subr.bf16.mxu0 0
        %928 = vmatpush1.bf16.msra.mxu0 %v272
        %929 = vmatprep.subr.bf16.mxu0 0
        %930 = vmatpush2.bf16.msra.mxu0 0
        %931 = vmatprep.subr.bf16.mxu0 0
        %932 = vmatpush2.bf16.msra.mxu0 0
        %933 = vmatprep.subr.bf16.mxu0 0
        %934 = vmatpush2.bf16.msra.mxu0 0
        %935 = vmatprep.subr.bf16.mxu0 0
        %936 = vmatpush2.bf16.msra.mxu0 0
        %937 = vmatprep.subr.bf16.mxu0 0
        %938 = vmatpush2.bf16.msra.mxu0 0
        %939 = vmatprep.subr.bf16.mxu0 0
        %940 = vmatpush2.bf16.msra.mxu0 0
        %941 = vmatprep.subr.bf16.mxu0 0
        %942 = vmatpush2.bf16.msra.mxu0 0
        %943 = vmatprep.subr.bf16.mxu0 0
        %944 = vmatpush2.bf16.msra.mxu0 0
        %945 = vmatprep.mubr.bf16.mxu0 0
        %946 = vmatmul.mubr.bf16.gmra.mxu0 %v855
        %v947 = vpop.f32.mrf.mxu0
        %v948 = vadd.f32 0.0, %v947
        %v949 = vpop.f32.mrf.mxu0
        %v950 = vpop.f32.mrf.mxu0
        %v951 = vadd.f32 0.0, %v950
        %v952 = vpop.f32.mrf.mxu0
        %953 = vdwg.mxu0
        %v954 = vpack.c.bf16 %v951, %v948
        %v956 = vsel %vm349, %v954, 0
        %958 = vmatprep.subr.bf16.mxu0 0
        %959 = vmatpush1.bf16.msra.mxu0 0
        %960 = vmatprep.subr.bf16.mxu0 0
        %961 = vmatpush1.bf16.msra.mxu0 0
        %962 = vmatprep.subr.bf16.mxu0 0
        %963 = vmatpush1.bf16.msra.mxu0 0
        %964 = vmatprep.subr.bf16.mxu0 0
        %965 = vmatpush1.bf16.msra.mxu0 0
        %966 = vmatprep.subr.bf16.mxu0 0
        %967 = vmatpush1.bf16.msra.mxu0 0
        %968 = vmatprep.subr.bf16.mxu0 0
        %969 = vmatpush1.bf16.msra.mxu0 0
        %970 = vmatprep.subr.bf16.mxu0 0
        %971 = vmatpush1.bf16.msra.mxu0 %v837
        %972 = vmatprep.subr.bf16.mxu0 0
        %973 = vmatpush1.bf16.msra.mxu0 %v836
        %974 = vmatprep.subr.bf16.mxu0 0
        %975 = vmatpush2.bf16.msra.mxu0 0
        %976 = vmatprep.subr.bf16.mxu0 0
        %977 = vmatpush2.bf16.msra.mxu0 0
        %978 = vmatprep.subr.bf16.mxu0 0
        %979 = vmatpush2.bf16.msra.mxu0 0
        %980 = vmatprep.subr.bf16.mxu0 0
        %981 = vmatpush2.bf16.msra.mxu0 0
        %982 = vmatprep.subr.bf16.mxu0 0
        %983 = vmatpush2.bf16.msra.mxu0 0
        %984 = vmatprep.subr.bf16.mxu0 0
        %985 = vmatpush2.bf16.msra.mxu0 0
        %986 = vmatprep.subr.bf16.mxu0 0
        %987 = vmatpush2.bf16.msra.mxu0 0
        %988 = vmatprep.subr.bf16.mxu0 0
        %989 = vmatpush2.bf16.msra.mxu0 0
        %990 = vmatprep.mubr.bf16.mxu0 0
        %991 = vmatmul.mubr.bf16.gmra.mxu0 %v956
        %v992 = vpop.f32.mrf.mxu0
        %v993 = vadd.f32 0.0, %v992
        %v994 = vpop.f32.mrf.mxu0
        %v995 = vpop.f32.mrf.mxu0
        %v996 = vadd.f32 0.0, %v995
        %v997 = vpop.f32.mrf.mxu0
        %998 = vdwg.mxu0
        %v999 = vsel %vm741, %v993, 0.0
        %vm1000 = vcmask 74752
        %v1001 = vsel %vm1000, %v996, 0.0
        %v1002 = vadd.f32 %v999, %v1001
        %1003 = vadd.xlane.f32.xlu0 %v1002
        %v1004 = vpop.xlane.xlu0 %1003
        %v1005 = vrot.slane %v1004, 4
        %v1006 = vadd.f32 %v1004, %v1005
        %v1007 = vrot.slane %v1006, 2
        %v1008 = vadd.f32 %v1006, %v1007
        %v1009 = vrot.slane %v1008, 1
        %v1010 = vadd.f32 %v1008, %v1009
        %s1011 = vtos %v1010
        %v1012 = vstv %s1011
        %v1013 = vadd.f32 %v1012, 1e-06
        %v1014 = vrcp.pop %v1013
        %v1015 = vmul.f32 %v993, %v1014
        %v1016 = vmul.f32 %v996, %v1014
        %v1017 = vpack.c.bf16 %v1016, %v1015
        %v1018 = vpack.c.bf16 %v912, %v911
        %v1020 = vsel %vm741, %v1017, 0
        %vm1022 = vcmask 1044480
        %v1024 = vsel %vm1022, %v1018, 0
        %1026 = vmatprep.subr.bf16.mxu0 0
        %1027 = vmatpush1.bf16.msra.mxu0 0
        %1028 = vmatprep.subr.bf16.mxu0 0
        %1029 = vmatpush1.bf16.msra.mxu0 0
        %1030 = vmatprep.subr.bf16.mxu0 0
        %1031 = vmatpush1.bf16.msra.mxu0 0
        %1032 = vmatprep.subr.bf16.mxu0 0
        %1033 = vmatpush1.bf16.msra.mxu0 0
        %1034 = vmatprep.subr.bf16.mxu0 0
        %1035 = vmatpush1.bf16.msra.mxu0 0
        %1036 = vmatprep.subr.bf16.mxu0 0
        %1037 = vmatpush1.bf16.msra.mxu0 0
        %1038 = vmatprep.subr.bf16.mxu0 0
        %1039 = vmatpush1.bf16.msra.mxu0 0
        %1040 = vmatprep.subr.bf16.mxu0 0
        %1041 = vmatpush1.bf16.msra.mxu0 %v1024
        %1042 = vmatprep.subr.bf16.mxu0 0
        %1043 = vmatpush2.bf16.msra.mxu0 0
        %1044 = vmatprep.subr.bf16.mxu0 0
        %1045 = vmatpush2.bf16.msra.mxu0 0
        %1046 = vmatprep.subr.bf16.mxu0 0
        %1047 = vmatpush2.bf16.msra.mxu0 0
        %1048 = vmatprep.subr.bf16.mxu0 0
        %1049 = vmatpush2.bf16.msra.mxu0 0
        %1050 = vmatprep.subr.bf16.mxu0 0
        %1051 = vmatpush2.bf16.msra.mxu0 0
        %1052 = vmatprep.subr.bf16.mxu0 0
        %1053 = vmatpush2.bf16.msra.mxu0 0
        %1054 = vmatprep.subr.bf16.mxu0 0
        %1055 = vmatpush2.bf16.msra.mxu0 0
        %1056 = vmatprep.subr.bf16.mxu0 0
        %1057 = vmatpush2.bf16.msra.mxu0 0
        %1058 = vmatprep.mubr.bf16.mxu0 0
        %1059 = vmatmul.mubr.bf16.gmra.mxu0 %v1020
        %v1060 = vpop.f32.mrf.mxu0
        %v1061 = vadd.f32 0.0, %v1060
        %v1062 = vpop.f32.mrf.mxu0
        %v1063 = vpop.f32.mrf.mxu0
        %v1064 = vadd.f32 0.0, %v1063
        %v1065 = vpop.f32.mrf.mxu0
        %1066 = vdwg.mxu0
        %v1067 = vpack.c.bf16 %v1064, %v1061
        %v1068 = vpack.c.bf16 %v674, %v673
        %v1069 = vpack.c.bf16 %v676, %v675
        %v1070 = vlaneseq
        %v1071 = vshrl.u32 %v1070, 7
        %v1072 = vsub.s32 0, %v1071
        %v1073 = vrot.slane %v677, %v1072
        %v1075 = vsel %vm349, %v1067, 0
        %1077 = vmatprep.subr.bf16.mxu0 0
        %1078 = vmatpush1.bf16.msra.mxu0 0
        %1079 = vmatprep.subr.bf16.mxu0 0
        %1080 = vmatpush1.bf16.msra.mxu0 0
        %1081 = vmatprep.subr.bf16.mxu0 0
        %1082 = vmatpush1.bf16.msra.mxu0 0
        %1083 = vmatprep.subr.bf16.mxu0 0
        %1084 = vmatpush1.bf16.msra.mxu0 0
        %1085 = vmatprep.subr.bf16.mxu0 0
        %1086 = vmatpush1.bf16.msra.mxu0 0
        %1087 = vmatprep.subr.bf16.mxu0 0
        %1088 = vmatpush1.bf16.msra.mxu0 0
        %1089 = vmatprep.subr.bf16.mxu0 0
        %1090 = vmatpush1.bf16.msra.mxu0 %v1069
        %1091 = vmatprep.subr.bf16.mxu0 0
        %1092 = vmatpush1.bf16.msra.mxu0 %v1068
        %1093 = vmatprep.subr.bf16.mxu0 0
        %1094 = vmatpush2.bf16.msra.mxu0 0
        %1095 = vmatprep.subr.bf16.mxu0 0
        %1096 = vmatpush2.bf16.msra.mxu0 0
        %1097 = vmatprep.subr.bf16.mxu0 0
        %1098 = vmatpush2.bf16.msra.mxu0 0
        %1099 = vmatprep.subr.bf16.mxu0 0
        %1100 = vmatpush2.bf16.msra.mxu0 0
        %1101 = vmatprep.subr.bf16.mxu0 0
        %1102 = vmatpush2.bf16.msra.mxu0 0
        %1103 = vmatprep.subr.bf16.mxu0 0
        %1104 = vmatpush2.bf16.msra.mxu0 0
        %1105 = vmatprep.subr.bf16.mxu0 0
        %1106 = vmatpush2.bf16.msra.mxu0 0
        %1107 = vmatprep.subr.bf16.mxu0 0
        %1108 = vmatpush2.bf16.msra.mxu0 0
        %1109 = vmatprep.mubr.bf16.mxu0 0
        %1110 = vmatmul.mubr.bf16.gmra.mxu0 %v1075
        %v1111 = vpop.f32.mrf.mxu0
        %v1112 = vadd.f32 %v1073, %v1111
        %v1113 = vpop.f32.mrf.mxu0
        %v1114 = vpop.f32.mrf.mxu0
        %v1115 = vadd.f32 %v1073, %v1114
        %v1116 = vpop.f32.mrf.mxu0
        %1117 = vdwg.mxu0
        %v1118 = vmax.f32 %v1112, 0.0
        %v1119 = vmax.f32 %v1115, 0.0
        %v1120 = vpack.c.bf16 %v1119, %v1118
        %v1122 = vsel %vm741, %v836, 0
        %v1125 = vsel %vm741, %v837, 0
        %v1128 = vsel %vm1022, %v1120, 0
        %1130 = vmatprep.subr.bf16.mxu0 0
        %1131 = vmatpush1.bf16.msra.mxu0 0
        %1132 = vmatprep.subr.bf16.mxu0 0
        %1133 = vmatpush1.bf16.msra.mxu0 0
        %1134 = vmatprep.subr.bf16.mxu0 0
        %1135 = vmatpush1.bf16.msra.mxu0 0
        %1136 = vmatprep.subr.bf16.mxu0 0
        %1137 = vmatpush1.bf16.msra.mxu0 0
        %1138 = vmatprep.subr.bf16.mxu0 0
        %1139 = vmatpush1.bf16.msra.mxu0 0
        %1140 = vmatprep.subr.bf16.mxu0 0
        %1141 = vmatpush1.bf16.msra.mxu0 0
        %1142 = vmatprep.subr.bf16.mxu0 0
        %1143 = vmatpush1.bf16.msra.mxu0 0
        %1144 = vmatprep.subr.bf16.mxu0 0
        %1145 = vmatpush1.bf16.msra.mxu0 %v1128
        %1146 = vmatprep.subr.bf16.mxu0 0
        %1147 = vmatpush2.bf16.msra.mxu0 0
        %1148 = vmatprep.subr.bf16.mxu0 0
        %1149 = vmatpush2.bf16.msra.mxu0 0
        %1150 = vmatprep.subr.bf16.mxu0 0
        %1151 = vmatpush2.bf16.msra.mxu0 0
        %1152 = vmatprep.subr.bf16.mxu0 0
        %1153 = vmatpush2.bf16.msra.mxu0 0
        %1154 = vmatprep.subr.bf16.mxu0 0
        %1155 = vmatpush2.bf16.msra.mxu0 0
        %1156 = vmatprep.subr.bf16.mxu0 0
        %1157 = vmatpush2.bf16.msra.mxu0 0
        %1158 = vmatprep.subr.bf16.mxu0 0
        %1159 = vmatpush2.bf16.msra.mxu0 0
        %1160 = vmatprep.subr.bf16.mxu0 0
        %1161 = vmatpush2.bf16.msra.mxu0 0
        %1162 = vmatprep.mubr.bf16.mxu0 0
        %1163 = vmatmul.mubr.bf16.gmra.mxu0 %v1122
        %v1164 = vpop.f32.mrf.mxu0
        %v1165 = vadd.f32 0.0, %v1164
        %v1166 = vpop.f32.mrf.mxu0
        %v1167 = vpop.f32.mrf.mxu0
        %v1168 = vadd.f32 0.0, %v1167
        %v1169 = vpop.f32.mrf.mxu0
        %1170 = vmatprep.mubr.bf16.mxu0 0
        %1171 = vmatmul.mubr.bf16.gmra.mxu0 %v1125
        %v1172 = vpop.f32.mrf.mxu0
        %v1173 = vadd.f32 0.0, %v1172
        %v1174 = vpop.f32.mrf.mxu0
        %v1175 = vpop.f32.mrf.mxu0
        %v1176 = vadd.f32 0.0, %v1175
        %v1177 = vpop.f32.mrf.mxu0
        %1178 = vdwg.mxu0
        %v1179 = vld [vmem:[%s4 + $0x20] sm:$0xff]
        %v1180 = vld [vmem:[%s4 + $0x28] sm:$0xff]
        %v1181 = vld [vmem:[%s4 + $0x30] sm:$0xff]
        %v1182 = vld [vmem:[%s4 + $0x38] sm:$0xff]
        %v1183 = vpack.c.bf16 %v1168, %v1165
        %v1184 = vpack.c.bf16 %v1176, %v1173
        %v1185 = vpack.c.bf16 %v1180, %v1179
        %v1186 = vpack.c.bf16 %v1182, %v1181
        %v1188 = vsel %vm349, %v1183, 0
        %v1191 = vsel %vm349, %v1184, 0
        %1193 = vmatprep.subr.bf16.mxu0 0
        %1194 = vmatpush1.bf16.msra.mxu0 0
        %1195 = vmatprep.subr.bf16.mxu0 0
        %1196 = vmatpush1.bf16.msra.mxu0 0
        %1197 = vmatprep.subr.bf16.mxu0 0
        %1198 = vmatpush1.bf16.msra.mxu0 0
        %1199 = vmatprep.subr.bf16.mxu0 0
        %1200 = vmatpush1.bf16.msra.mxu0 0
        %1201 = vmatprep.subr.bf16.mxu0 0
        %1202 = vmatpush1.bf16.msra.mxu0 0
        %1203 = vmatprep.subr.bf16.mxu0 0
        %1204 = vmatpush1.bf16.msra.mxu0 0
        %1205 = vmatprep.subr.bf16.mxu0 0
        %1206 = vmatpush1.bf16.msra.mxu0 %v1186
        %1207 = vmatprep.subr.bf16.mxu0 0
        %1208 = vmatpush1.bf16.msra.mxu0 %v1185
        %1209 = vmatprep.subr.bf16.mxu0 0
        %1210 = vmatpush2.bf16.msra.mxu0 0
        %1211 = vmatprep.subr.bf16.mxu0 0
        %1212 = vmatpush2.bf16.msra.mxu0 0
        %1213 = vmatprep.subr.bf16.mxu0 0
        %1214 = vmatpush2.bf16.msra.mxu0 0
        %1215 = vmatprep.subr.bf16.mxu0 0
        %1216 = vmatpush2.bf16.msra.mxu0 0
        %1217 = vmatprep.subr.bf16.mxu0 0
        %1218 = vmatpush2.bf16.msra.mxu0 0
        %1219 = vmatprep.subr.bf16.mxu0 0
        %1220 = vmatpush2.bf16.msra.mxu0 0
        %1221 = vmatprep.subr.bf16.mxu0 0
        %1222 = vmatpush2.bf16.msra.mxu0 0
        %1223 = vmatprep.subr.bf16.mxu0 0
        %1224 = vmatpush2.bf16.msra.mxu0 0
        %1225 = vmatprep.mubr.bf16.mxu0 0
        %1226 = vmatmul.mubr.bf16.gmra.mxu0 %v1188
        %v1227 = vpop.f32.mrf.mxu0
        %v1228 = vadd.f32 0.0, %v1227
        %v1229 = vpop.f32.mrf.mxu0
        %v1230 = vpop.f32.mrf.mxu0
        %v1231 = vadd.f32 0.0, %v1230
        %v1232 = vpop.f32.mrf.mxu0
        %1233 = vmatprep.mubr.bf16.mxu0 0
        %1234 = vmatmul.mubr.bf16.gmra.mxu0 %v1191
        %v1235 = vpop.f32.mrf.mxu0
        %v1236 = vadd.f32 0.0, %v1235
        %v1237 = vpop.f32.mrf.mxu0
        %v1238 = vpop.f32.mrf.mxu0
        %v1239 = vadd.f32 0.0, %v1238
        %v1240 = vpop.f32.mrf.mxu0
        %1241 = vdwg.mxu0
        %v1242 = vadd.f32 %v664, %v1228
        %v1243 = vadd.f32 %v665, %v1231
        %v1244 = vadd.f32 %v666, %v1236
        %v1245 = vadd.f32 %v667, %v1239
        %v1246 = vld [vmem:[%s3 + $0x88] sm:$0xff]
        %v1247 = vld [vmem:[%s3 + $0x90] sm:$0xff]
        %v1248 = vld [vmem:[%s3 + $0x98] sm:$0xff]
        %v1249 = vld [vmem:[%s3 + $0xa0] sm:$0xff]
        %v1250 = vld [vmem:[%s3 + $0xa8] sm:$0x1]
        %v1251 = vld [vmem:[%s3 + $0xb0] sm:$0xff]
        %v1252 = vld [vmem:[%s3 + $0xb8] sm:$0xff]
        %v1253 = vld [vmem:[%s3 + $0xc0] sm:$0xff]
        %v1254 = vld [vmem:[%s3 + $0xc8] sm:$0xff]
        %v1255 = vld [vmem:[%s3 + $0xd0] sm:$0x1]
        %s1256 = scalar_lea.vmem %s262, 32
        %v1257 = vld [vmem:[%s1256] sm:$0xff]
        %v1258 = vld [vmem:[%s1256 + $0x8] sm:$0x3]
        %v1259 = vpack.c.bf16 %v1247, %v1246
        %v1260 = vpack.c.bf16 %v1249, %v1248
        %v1261 = vlaneseq
        %v1262 = vshrl.u32 %v1261, 7
        %v1263 = vsub.s32 0, %v1262
        %v1264 = vrot.slane %v1250, %v1263
        %v1265 = vsel %vm349, %v1120, 0
        %1267 = vmatprep.subr.bf16.mxu0 0
        %1268 = vmatpush1.bf16.msra.mxu0 0
        %1269 = vmatprep.subr.bf16.mxu0 0
        %1270 = vmatpush1.bf16.msra.mxu0 0
        %1271 = vmatprep.subr.bf16.mxu0 0
        %1272 = vmatpush1.bf16.msra.mxu0 0
        %1273 = vmatprep.subr.bf16.mxu0 0
        %1274 = vmatpush1.bf16.msra.mxu0 0
        %1275 = vmatprep.subr.bf16.mxu0 0
        %1276 = vmatpush1.bf16.msra.mxu0 0
        %1277 = vmatprep.subr.bf16.mxu0 0
        %1278 = vmatpush1.bf16.msra.mxu0 0
        %1279 = vmatprep.subr.bf16.mxu0 0
        %1280 = vmatpush1.bf16.msra.mxu0 %v1260
        %1281 = vmatprep.subr.bf16.mxu0 0
        %1282 = vmatpush1.bf16.msra.mxu0 %v1259
        %1283 = vmatprep.subr.bf16.mxu0 0
        %1284 = vmatpush2.bf16.msra.mxu0 0
        %1285 = vmatprep.subr.bf16.mxu0 0
        %1286 = vmatpush2.bf16.msra.mxu0 0
        %1287 = vmatprep.subr.bf16.mxu0 0
        %1288 = vmatpush2.bf16.msra.mxu0 0
        %1289 = vmatprep.subr.bf16.mxu0 0
        %1290 = vmatpush2.bf16.msra.mxu0 0
        %1291 = vmatprep.subr.bf16.mxu0 0
        %1292 = vmatpush2.bf16.msra.mxu0 0
        %1293 = vmatprep.subr.bf16.mxu0 0
        %1294 = vmatpush2.bf16.msra.mxu0 0
        %1295 = vmatprep.subr.bf16.mxu0 0
        %1296 = vmatpush2.bf16.msra.mxu0 0
        %1297 = vmatprep.subr.bf16.mxu0 0
        %1298 = vmatpush2.bf16.msra.mxu0 0
        %1299 = vmatprep.mubr.bf16.mxu0 0
        %1300 = vmatmul.mubr.bf16.gmra.mxu0 %v1265
        %v1301 = vpop.f32.mrf.mxu0
        %v1302 = vadd.f32 %v1264, %v1301
        %v1303 = vpop.f32.mrf.mxu0
        %v1304 = vpop.f32.mrf.mxu0
        %v1305 = vadd.f32 %v1264, %v1304
        %v1306 = vpop.f32.mrf.mxu0
        %1307 = vdwg.mxu0
        %v1308 = vadd.f32 %v1302, %v1257
        %v1309 = vadd.f32 %v1305, %v1258
        %vm1310 = vcmask 39936
        %v1311 = vsel %vm1310, %v1308, -inf
        %1312 = vmax.xlane.f32.xlu0 %v1311
        %v1313 = vpop.xlane.xlu0 %1312
        %vm1314 = vcmask 33792
        %v1315 = vsel %vm1314, %v1309, -inf
        %1316 = vmax.xlane.f32.xlu0 %v1315
        %v1317 = vpop.xlane.xlu0 %1316
        %vm1318 = vcmp.eq.f32.partialorder %v1308, %v1313
        %vm1319 = vcmp.eq.f32.partialorder %v1309, %v1317
        %v1320 = vsel %vm1318, %v755, 5
        %v1321 = vsel %vm1319, %v755, 5
        %v1322 = vsel %vm1310, %v1320, 2147483647
        %v1323 = vand.u32 %v1322, 65535
        %v1324 = vshra.s32 %v1322, 16
        %v1325 = vcvt.s32.f32 %v1323
        %v1326 = vcvt.s32.f32 %v1324
        %1327 = vmin.xlane.f32.xlu0 %v1326
        %v1328 = vpop.xlane.xlu0 %1327
        %vm1329 = vcmp.eq.f32.partialorder %v1326, %v1328
        %v1330 = vsel %vm1329, %v1325, inf
        %1331 = vmin.xlane.f32.xlu0 %v1330
        %v1332 = vpop.xlane.xlu0 %1331
        %v1333 = vcvt.f32.s32 %v1332
        %v1334 = vcvt.f32.s32 %v1328
        %v1335 = vshll.u32 %v1334, 16
        %v1336 = vadd.s32 %v1335, %v1333
        %v1337 = vsel %vm1314, %v1321, 2147483647
        %v1338 = vand.u32 %v1337, 65535
        %v1339 = vshra.s32 %v1337, 16
        %v1340 = vcvt.s32.f32 %v1338
        %v1341 = vcvt.s32.f32 %v1339
        %1342 = vmin.xlane.f32.xlu0 %v1341
        %v1343 = vpop.xlane.xlu0 %1342
        %vm1344 = vcmp.eq.f32.partialorder %v1341, %v1343
        %v1345 = vsel %vm1344, %v1340, inf
        %1346 = vmin.xlane.f32.xlu0 %v1345
        %v1347 = vpop.xlane.xlu0 %1346
        %v1348 = vcvt.f32.s32 %v1347
        %v1349 = vcvt.f32.s32 %v1343
        %v1350 = vshll.u32 %v1349, 16
        %v1351 = vadd.s32 %v1350, %v1348
        %vm1352 = vcmp.eq.s32.totalorder %v755, %v1336
        %vm1353 = vcmp.eq.s32.totalorder %v755, %v1351
        %v1354 = vsel %vm1352, 1, 0
        %v1355 = vsel %vm1353, 1, 0
        %v1356 = vcvt.s32.f32 %v1354
        %v1357 = vcvt.s32.f32 %v1355
        %v1358 = vpack.c.bf16 %v1357, %v1356
        %v1360 = vsel %vm1022, %v1358, 0
        %1362 = vmatprep.subr.bf16.mxu0 0
        %1363 = vmatpush1.bf16.msra.mxu0 0
        %1364 = vmatprep.subr.bf16.mxu0 0
        %1365 = vmatpush1.bf16.msra.mxu0 0
        %1366 = vmatprep.subr.bf16.mxu0 0
        %1367 = vmatpush1.bf16.msra.mxu0 0
        %1368 = vmatprep.subr.bf16.mxu0 0
        %1369 = vmatpush1.bf16.msra.mxu0 0
        %1370 = vmatprep.subr.bf16.mxu0 0
        %1371 = vmatpush1.bf16.msra.mxu0 0
        %1372 = vmatprep.subr.bf16.mxu0 0
        %1373 = vmatpush1.bf16.msra.mxu0 0
        %1374 = vmatprep.subr.bf16.mxu0 0
        %1375 = vmatpush1.bf16.msra.mxu0 0
        %1376 = vmatprep.subr.bf16.mxu0 0
        %1377 = vmatpush1.bf16.msra.mxu0 %v1360
        %1378 = vmatprep.subr.bf16.mxu0 0
        %1379 = vmatpush2.bf16.msra.mxu0 0
        %1380 = vmatprep.subr.bf16.mxu0 0
        %1381 = vmatpush2.bf16.msra.mxu0 0
        %1382 = vmatprep.subr.bf16.mxu0 0
        %1383 = vmatpush2.bf16.msra.mxu0 0
        %1384 = vmatprep.subr.bf16.mxu0 0
        %1385 = vmatpush2.bf16.msra.mxu0 0
        %1386 = vmatprep.subr.bf16.mxu0 0
        %1387 = vmatpush2.bf16.msra.mxu0 0
        %1388 = vmatprep.subr.bf16.mxu0 0
        %1389 = vmatpush2.bf16.msra.mxu0 0
        %1390 = vmatprep.subr.bf16.mxu0 0
        %1391 = vmatpush2.bf16.msra.mxu0 0
        %1392 = vmatprep.subr.bf16.mxu0 0
        %1393 = vmatpush2.bf16.msra.mxu0 0
        %1394 = vmatprep.mubr.bf16.mxu0 0
        %1395 = vmatmul.mubr.bf16.gmra.mxu0 %v1122
        %v1396 = vpop.f32.mrf.mxu0
        %v1397 = vadd.f32 0.0, %v1396
        %v1398 = vpop.f32.mrf.mxu0
        %v1399 = vpop.f32.mrf.mxu0
        %v1400 = vadd.f32 0.0, %v1399
        %v1401 = vpop.f32.mrf.mxu0
        %1402 = vmatprep.mubr.bf16.mxu0 0
        %1403 = vmatmul.mubr.bf16.gmra.mxu0 %v1125
        %v1404 = vpop.f32.mrf.mxu0
        %v1405 = vadd.f32 0.0, %v1404
        %v1406 = vpop.f32.mrf.mxu0
        %v1407 = vpop.f32.mrf.mxu0
        %v1408 = vadd.f32 0.0, %v1407
        %v1409 = vpop.f32.mrf.mxu0
        %1410 = vdwg.mxu0
        %1411 = vxpose.xlu0.c.b16.start [1/8] %v1358, 128
        %1412 = vxpose.xlu0.c.b16.cont [2/8] 0, 128
        %1413 = vxpose.xlu0.c.b16.cont [3/8] 0, 128
        %1414 = vxpose.xlu0.c.b16.cont [4/8] 0, 128
        %1415 = vxpose.xlu0.c.b16.cont [5/8] 0, 128
        %1416 = vxpose.xlu0.c.b16.cont [6/8] 0, 128
        %1417 = vxpose.xlu0.c.b16.cont [7/8] 0, 128
        %1418 = vxpose.xlu0.c.b16.end [8/8] 0, 128
        %v1419 = vpop.trf.xlu0
        %v1420 = vpop.trf.xlu0
        %v1421 = vpop.trf.xlu0
        %v1422 = vpop.trf.xlu0
        %v1423 = vpop.trf.xlu0
        %v1424 = vpop.trf.xlu0
        %v1425 = vpop.trf.xlu0
        %v1426 = vpop.trf.xlu0
        %v1428 = vsel %vm741, %v1419, 0
        %1430 = vmatprep.subr.bf16.mxu0 0
        %1431 = vmatpush1.bf16.msra.mxu0 0
        %1432 = vmatprep.subr.bf16.mxu0 0
        %1433 = vmatpush1.bf16.msra.mxu0 0
        %1434 = vmatprep.subr.bf16.mxu0 0
        %1435 = vmatpush1.bf16.msra.mxu0 0
        %1436 = vmatprep.subr.bf16.mxu0 0
        %1437 = vmatpush1.bf16.msra.mxu0 0
        %1438 = vmatprep.subr.bf16.mxu0 0
        %1439 = vmatpush1.bf16.msra.mxu0 0
        %1440 = vmatprep.subr.bf16.mxu0 0
        %1441 = vmatpush1.bf16.msra.mxu0 0
        %1442 = vmatprep.subr.bf16.mxu0 0
        %1443 = vmatpush1.bf16.msra.mxu0 0
        %1444 = vmatprep.subr.bf16.mxu0 0
        %1445 = vmatpush1.bf16.msra.mxu0 %v1128
        %1446 = vmatprep.subr.bf16.mxu0 0
        %1447 = vmatpush2.bf16.msra.mxu0 0
        %1448 = vmatprep.subr.bf16.mxu0 0
        %1449 = vmatpush2.bf16.msra.mxu0 0
        %1450 = vmatprep.subr.bf16.mxu0 0
        %1451 = vmatpush2.bf16.msra.mxu0 0
        %1452 = vmatprep.subr.bf16.mxu0 0
        %1453 = vmatpush2.bf16.msra.mxu0 0
        %1454 = vmatprep.subr.bf16.mxu0 0
        %1455 = vmatpush2.bf16.msra.mxu0 0
        %1456 = vmatprep.subr.bf16.mxu0 0
        %1457 = vmatpush2.bf16.msra.mxu0 0
        %1458 = vmatprep.subr.bf16.mxu0 0
        %1459 = vmatpush2.bf16.msra.mxu0 0
        %1460 = vmatprep.subr.bf16.mxu0 0
        %1461 = vmatpush2.bf16.msra.mxu0 0
        %1462 = vmatprep.mubr.bf16.mxu0 0
        %1463 = vmatmul.mubr.bf16.gmra.mxu0 %v1428
        %v1464 = vpop.f32.mrf.mxu0
        %v1465 = vadd.f32 0.0, %v1464
        %v1466 = vpop.f32.mrf.mxu0
        %v1467 = vpop.f32.mrf.mxu0
        %v1468 = vpop.f32.mrf.mxu0
        %1469 = vdwg.mxu0
        %v1470 = vmul.f32 %v1465, %v1465
        %vm1471 = vcmask 258048
        %v1472 = vsel %vm1471, %v1470, 0.0
        %1473 = vadd.xlane.f32.xlu0 %v1472
        %v1474 = vpop.xlane.xlu0 %1473
        %v1475 = vmax.f32 %v1474, 1e-24
        %v1476 = vrsqrt.pop %v1475
        %v1477 = vmul.f32 %v1465, %v1476
        %v1478 = vsel %vm1022, %v1017, 0
        %1480 = vmatprep.subr.bf16.mxu0 0
        %1481 = vmatpush1.bf16.msra.mxu0 0
        %1482 = vmatprep.subr.bf16.mxu0 0
        %1483 = vmatpush1.bf16.msra.mxu0 0
        %1484 = vmatprep.subr.bf16.mxu0 0
        %1485 = vmatpush1.bf16.msra.mxu0 0
        %1486 = vmatprep.subr.bf16.mxu0 0
        %1487 = vmatpush1.bf16.msra.mxu0 0
        %1488 = vmatprep.subr.bf16.mxu0 0
        %1489 = vmatpush1.bf16.msra.mxu0 0
        %1490 = vmatprep.subr.bf16.mxu0 0
        %1491 = vmatpush1.bf16.msra.mxu0 0
        %1492 = vmatprep.subr.bf16.mxu0 0
        %1493 = vmatpush1.bf16.msra.mxu0 0
        %1494 = vmatprep.subr.bf16.mxu0 0
        %1495 = vmatpush1.bf16.msra.mxu0 %v1478
        %1496 = vmatprep.subr.bf16.mxu0 0
        %1497 = vmatpush2.bf16.msra.mxu0 0
        %1498 = vmatprep.subr.bf16.mxu0 0
        %1499 = vmatpush2.bf16.msra.mxu0 0
        %1500 = vmatprep.subr.bf16.mxu0 0
        %1501 = vmatpush2.bf16.msra.mxu0 0
        %1502 = vmatprep.subr.bf16.mxu0 0
        %1503 = vmatpush2.bf16.msra.mxu0 0
        %1504 = vmatprep.subr.bf16.mxu0 0
        %1505 = vmatpush2.bf16.msra.mxu0 0
        %1506 = vmatprep.subr.bf16.mxu0 0
        %1507 = vmatpush2.bf16.msra.mxu0 0
        %1508 = vmatprep.subr.bf16.mxu0 0
        %1509 = vmatpush2.bf16.msra.mxu0 0
        %1510 = vmatprep.subr.bf16.mxu0 0
        %1511 = vmatpush2.bf16.msra.mxu0 0
        %1512 = vmatprep.mubr.bf16.mxu0 0
        %1513 = vmatmul.mubr.bf16.gmra.mxu0 %v1428
        %v1514 = vpop.f32.mrf.mxu0
        %v1515 = vadd.f32 0.0, %v1514
        %v1516 = vpop.f32.mrf.mxu0
        %v1517 = vpop.f32.mrf.mxu0
        %v1518 = vpop.f32.mrf.mxu0
        %1519 = vdwg.mxu0
        %v1520 = vpack.c.bf16 %v1515, %v1515
        %v1522 = vsel %vm741, %v1520, 0
        %1524 = vmatprep.subr.bf16.mxu0 0
        %1525 = vmatpush1.bf16.msra.mxu0 0
        %1526 = vmatprep.subr.bf16.mxu0 0
        %1527 = vmatpush1.bf16.msra.mxu0 0
        %1528 = vmatprep.subr.bf16.mxu0 0
        %1529 = vmatpush1.bf16.msra.mxu0 0
        %1530 = vmatprep.subr.bf16.mxu0 0
        %1531 = vmatpush1.bf16.msra.mxu0 0
        %1532 = vmatprep.subr.bf16.mxu0 0
        %1533 = vmatpush1.bf16.msra.mxu0 0
        %1534 = vmatprep.subr.bf16.mxu0 0
        %1535 = vmatpush1.bf16.msra.mxu0 0
        %1536 = vmatprep.subr.bf16.mxu0 0
        %1537 = vmatpush1.bf16.msra.mxu0 0
        %1538 = vmatprep.subr.bf16.mxu0 0
        %1539 = vmatpush1.bf16.msra.mxu0 %v1360
        %1540 = vmatprep.subr.bf16.mxu0 0
        %1541 = vmatpush2.bf16.msra.mxu0 0
        %1542 = vmatprep.subr.bf16.mxu0 0
        %1543 = vmatpush2.bf16.msra.mxu0 0
        %1544 = vmatprep.subr.bf16.mxu0 0
        %1545 = vmatpush2.bf16.msra.mxu0 0
        %1546 = vmatprep.subr.bf16.mxu0 0
        %1547 = vmatpush2.bf16.msra.mxu0 0
        %1548 = vmatprep.subr.bf16.mxu0 0
        %1549 = vmatpush2.bf16.msra.mxu0 0
        %1550 = vmatprep.subr.bf16.mxu0 0
        %1551 = vmatpush2.bf16.msra.mxu0 0
        %1552 = vmatprep.subr.bf16.mxu0 0
        %1553 = vmatpush2.bf16.msra.mxu0 0
        %1554 = vmatprep.subr.bf16.mxu0 0
        %1555 = vmatpush2.bf16.msra.mxu0 0
        %1556 = vmatprep.mubr.bf16.mxu0 0
        %1557 = vmatmul.mubr.bf16.gmra.mxu0 %v1522
        %v1558 = vpop.f32.mrf.mxu0
        %v1559 = vadd.f32 0.0, %v1558
        %v1560 = vpop.f32.mrf.mxu0
        %v1561 = vpop.f32.mrf.mxu0
        %v1562 = vpop.f32.mrf.mxu0
        %1563 = vdwg.mxu0
        %vm1564 = vcmask 36864
        %v1565 = vsel %vm1564, %v1559, 0.0
        %1566 = vadd.xlane.f32.xlu0 %v1565
        %v1567 = vpop.xlane.xlu0 %1566
        %v1568 = vrot.slane %v1567, 4
        %v1569 = vadd.f32 %v1567, %v1568
        %v1570 = vrot.slane %v1569, 2
        %v1571 = vadd.f32 %v1569, %v1570
        %v1572 = vrot.slane %v1571, 1
        %v1573 = vadd.f32 %v1571, %v1572
        %s1574 = vtos %v1573
        %v1575 = vstv %s1574
        %v1576 = vadd.f32 %v1575, 2.5e-07
        %v1577 = vrcp.pop %v1576
        %v1578 = vmul.f32 %v1559, %v1577
        %v1579 = vpack.c.bf16 %v1578, %v1578
        %v1580 = vpack.c.bf16 %v1477, %v1477
        %v1582 = vsel %vm1310, %v1579, 0
        %vm1584 = vcmask 1041408
        %vm1585 = vcmask 1042432
        %v1586 = vsel %vm1584, 4294967295, 65535
        %v1587 = vsel %vm1585, %v1586, 0
        %v1589 = vand.u32 %v1580, %v1587
        %1591 = vmatprep.subr.bf16.mxu0 0
        %1592 = vmatpush1.bf16.msra.mxu0 0
        %1593 = vmatprep.subr.bf16.mxu0 0
        %1594 = vmatpush1.bf16.msra.mxu0 0
        %1595 = vmatprep.subr.bf16.mxu0 0
        %1596 = vmatpush1.bf16.msra.mxu0 0
        %1597 = vmatprep.subr.bf16.mxu0 0
        %1598 = vmatpush1.bf16.msra.mxu0 0
        %1599 = vmatprep.subr.bf16.mxu0 0
        %1600 = vmatpush1.bf16.msra.mxu0 0
        %1601 = vmatprep.subr.bf16.mxu0 0
        %1602 = vmatpush1.bf16.msra.mxu0 0
        %1603 = vmatprep.subr.bf16.mxu0 0
        %1604 = vmatpush1.bf16.msra.mxu0 0
        %1605 = vmatprep.subr.bf16.mxu0 0
        %1606 = vmatpush1.bf16.msra.mxu0 %v1589
        %1607 = vmatprep.subr.bf16.mxu0 0
        %1608 = vmatpush2.bf16.msra.mxu0 0
        %1609 = vmatprep.subr.bf16.mxu0 0
        %1610 = vmatpush2.bf16.msra.mxu0 0
        %1611 = vmatprep.subr.bf16.mxu0 0
        %1612 = vmatpush2.bf16.msra.mxu0 0
        %1613 = vmatprep.subr.bf16.mxu0 0
        %1614 = vmatpush2.bf16.msra.mxu0 0
        %1615 = vmatprep.subr.bf16.mxu0 0
        %1616 = vmatpush2.bf16.msra.mxu0 0
        %1617 = vmatprep.subr.bf16.mxu0 0
        %1618 = vmatpush2.bf16.msra.mxu0 0
        %1619 = vmatprep.subr.bf16.mxu0 0
        %1620 = vmatpush2.bf16.msra.mxu0 0
        %1621 = vmatprep.subr.bf16.mxu0 0
        %1622 = vmatpush2.bf16.msra.mxu0 0
        %1623 = vmatprep.mubr.bf16.mxu0 0
        %1624 = vmatmul.mubr.bf16.gmra.mxu0 %v1582
        %v1625 = vpop.f32.mrf.mxu0
        %v1626 = vadd.f32 0.0, %v1625
        %v1627 = vpop.f32.mrf.mxu0
        %v1628 = vpop.f32.mrf.mxu0
        %v1629 = vpop.f32.mrf.mxu0
        %1630 = vdwg.mxu0
        %v1631 = vpack.c.bf16 %v1626, %v1626
        %v1632 = vpack.c.bf16 %v1252, %v1251
        %v1633 = vpack.c.bf16 %v1254, %v1253
        %v1634 = vlaneseq
        %v1635 = vshrl.u32 %v1634, 7
        %v1636 = vsub.s32 0, %v1635
        %v1637 = vrot.slane %v1255, %v1636
        %v1639 = vsel %vm349, %v1631, 0
        %1641 = vmatprep.subr.bf16.mxu0 0
        %1642 = vmatpush1.bf16.msra.mxu0 0
        %1643 = vmatprep.subr.bf16.mxu0 0
        %1644 = vmatpush1.bf16.msra.mxu0 0
        %1645 = vmatprep.subr.bf16.mxu0 0
        %1646 = vmatpush1.bf16.msra.mxu0 0
        %1647 = vmatprep.subr.bf16.mxu0 0
        %1648 = vmatpush1.bf16.msra.mxu0 0
        %1649 = vmatprep.subr.bf16.mxu0 0
        %1650 = vmatpush1.bf16.msra.mxu0 0
        %1651 = vmatprep.subr.bf16.mxu0 0
        %1652 = vmatpush1.bf16.msra.mxu0 0
        %1653 = vmatprep.subr.bf16.mxu0 0
        %1654 = vmatpush1.bf16.msra.mxu0 %v1633
        %1655 = vmatprep.subr.bf16.mxu0 0
        %1656 = vmatpush1.bf16.msra.mxu0 %v1632
        %1657 = vmatprep.subr.bf16.mxu0 0
        %1658 = vmatpush2.bf16.msra.mxu0 0
        %1659 = vmatprep.subr.bf16.mxu0 0
        %1660 = vmatpush2.bf16.msra.mxu0 0
        %1661 = vmatprep.subr.bf16.mxu0 0
        %1662 = vmatpush2.bf16.msra.mxu0 0
        %1663 = vmatprep.subr.bf16.mxu0 0
        %1664 = vmatpush2.bf16.msra.mxu0 0
        %1665 = vmatprep.subr.bf16.mxu0 0
        %1666 = vmatpush2.bf16.msra.mxu0 0
        %1667 = vmatprep.subr.bf16.mxu0 0
        %1668 = vmatpush2.bf16.msra.mxu0 0
        %1669 = vmatprep.subr.bf16.mxu0 0
        %1670 = vmatpush2.bf16.msra.mxu0 0
        %1671 = vmatprep.subr.bf16.mxu0 0
        %1672 = vmatpush2.bf16.msra.mxu0 0
        %1673 = vmatprep.mubr.bf16.mxu0 0
        %1674 = vmatmul.mubr.bf16.gmra.mxu0 %v1639
        %v1675 = vpop.f32.mrf.mxu0
        %v1676 = vadd.f32 %v1637, %v1675
        %v1677 = vpop.f32.mrf.mxu0
        %v1678 = vpop.f32.mrf.mxu0
        %v1679 = vpop.f32.mrf.mxu0
        %1680 = vdwg.mxu0
        %v1681 = vmax.f32 %v1676, 0.0
        %v1682 = vpack.c.bf16 %v1400, %v1397
        %v1683 = vpack.c.bf16 %v1408, %v1405
        %v1684 = vpack.c.bf16 %v1681, %v1681
        %v1686 = vsel %vm1310, %v1682, 0
        %v1689 = vsel %vm1310, %v1683, 0
        %v1692 = vand.u32 %v1684, %v1587
        %1694 = vmatprep.subr.bf16.mxu0 0
        %1695 = vmatpush1.bf16.msra.mxu0 0
        %1696 = vmatprep.subr.bf16.mxu0 0
        %1697 = vmatpush1.bf16.msra.mxu0 0
        %1698 = vmatprep.subr.bf16.mxu0 0
        %1699 = vmatpush1.bf16.msra.mxu0 0
        %1700 = vmatprep.subr.bf16.mxu0 0
        %1701 = vmatpush1.bf16.msra.mxu0 0
        %1702 = vmatprep.subr.bf16.mxu0 0
        %1703 = vmatpush1.bf16.msra.mxu0 0
        %1704 = vmatprep.subr.bf16.mxu0 0
        %1705 = vmatpush1.bf16.msra.mxu0 0
        %1706 = vmatprep.subr.bf16.mxu0 0
        %1707 = vmatpush1.bf16.msra.mxu0 0
        %1708 = vmatprep.subr.bf16.mxu0 0
        %1709 = vmatpush1.bf16.msra.mxu0 %v1692
        %1710 = vmatprep.subr.bf16.mxu0 0
        %1711 = vmatpush2.bf16.msra.mxu0 0
        %1712 = vmatprep.subr.bf16.mxu0 0
        %1713 = vmatpush2.bf16.msra.mxu0 0
        %1714 = vmatprep.subr.bf16.mxu0 0
        %1715 = vmatpush2.bf16.msra.mxu0 0
        %1716 = vmatprep.subr.bf16.mxu0 0
        %1717 = vmatpush2.bf16.msra.mxu0 0
        %1718 = vmatprep.subr.bf16.mxu0 0
        %1719 = vmatpush2.bf16.msra.mxu0 0
        %1720 = vmatprep.subr.bf16.mxu0 0
        %1721 = vmatpush2.bf16.msra.mxu0 0
        %1722 = vmatprep.subr.bf16.mxu0 0
        %1723 = vmatpush2.bf16.msra.mxu0 0
        %1724 = vmatprep.subr.bf16.mxu0 0
        %1725 = vmatpush2.bf16.msra.mxu0 0
        %1726 = vmatprep.mubr.bf16.mxu0 0
        %1727 = vmatmul.mubr.bf16.gmra.mxu0 %v1686
        %v1728 = vpop.f32.mrf.mxu0
        %v1729 = vadd.f32 0.0, %v1728
        %v1730 = vpop.f32.mrf.mxu0
        %v1731 = vpop.f32.mrf.mxu0
        %v1732 = vadd.f32 0.0, %v1731
        %v1733 = vpop.f32.mrf.mxu0
        %1734 = vmatprep.mubr.bf16.mxu0 0
        %1735 = vmatmul.mubr.bf16.gmra.mxu0 %v1689
        %v1736 = vpop.f32.mrf.mxu0
        %v1737 = vadd.f32 0.0, %v1736
        %v1738 = vpop.f32.mrf.mxu0
        %v1739 = vpop.f32.mrf.mxu0
        %v1740 = vadd.f32 0.0, %v1739
        %v1741 = vpop.f32.mrf.mxu0
        %1742 = vdwg.mxu0
        %v1743 = vld [vmem:[%s4 + $0x40] sm:$0xff]
        %v1744 = vld [vmem:[%s4 + $0x48] sm:$0xff]
        %v1745 = vld [vmem:[%s4 + $0x50] sm:$0xff]
        %v1746 = vld [vmem:[%s4 + $0x58] sm:$0xff]
        %v1747 = vpack.c.bf16 %v1732, %v1729
        %v1748 = vpack.c.bf16 %v1740, %v1737
        %v1749 = vpack.c.bf16 %v1744, %v1743
        %v1750 = vpack.c.bf16 %v1746, %v1745
        %v1752 = vsel %vm349, %v1747, 0
        %v1755 = vsel %vm349, %v1748, 0
        %1757 = vmatprep.subr.bf16.mxu0 0
        %1758 = vmatpush1.bf16.msra.mxu0 0
        %1759 = vmatprep.subr.bf16.mxu0 0
        %1760 = vmatpush1.bf16.msra.mxu0 0
        %1761 = vmatprep.subr.bf16.mxu0 0
        %1762 = vmatpush1.bf16.msra.mxu0 0
        %1763 = vmatprep.subr.bf16.mxu0 0
        %1764 = vmatpush1.bf16.msra.mxu0 0
        %1765 = vmatprep.subr.bf16.mxu0 0
        %1766 = vmatpush1.bf16.msra.mxu0 0
        %1767 = vmatprep.subr.bf16.mxu0 0
        %1768 = vmatpush1.bf16.msra.mxu0 0
        %1769 = vmatprep.subr.bf16.mxu0 0
        %1770 = vmatpush1.bf16.msra.mxu0 %v1750
        %1771 = vmatprep.subr.bf16.mxu0 0
        %1772 = vmatpush1.bf16.msra.mxu0 %v1749
        %1773 = vmatprep.subr.bf16.mxu0 0
        %1774 = vmatpush2.bf16.msra.mxu0 0
        %1775 = vmatprep.subr.bf16.mxu0 0
        %1776 = vmatpush2.bf16.msra.mxu0 0
        %1777 = vmatprep.subr.bf16.mxu0 0
        %1778 = vmatpush2.bf16.msra.mxu0 0
        %1779 = vmatprep.subr.bf16.mxu0 0
        %1780 = vmatpush2.bf16.msra.mxu0 0
        %1781 = vmatprep.subr.bf16.mxu0 0
        %1782 = vmatpush2.bf16.msra.mxu0 0
        %1783 = vmatprep.subr.bf16.mxu0 0
        %1784 = vmatpush2.bf16.msra.mxu0 0
        %1785 = vmatprep.subr.bf16.mxu0 0
        %1786 = vmatpush2.bf16.msra.mxu0 0
        %1787 = vmatprep.subr.bf16.mxu0 0
        %1788 = vmatpush2.bf16.msra.mxu0 0
        %1789 = vmatprep.mubr.bf16.mxu0 0
        %1790 = vmatmul.mubr.bf16.gmra.mxu0 %v1752
        %v1791 = vpop.f32.mrf.mxu0
        %v1792 = vadd.f32 0.0, %v1791
        %v1793 = vpop.f32.mrf.mxu0
        %v1794 = vpop.f32.mrf.mxu0
        %v1795 = vadd.f32 0.0, %v1794
        %v1796 = vpop.f32.mrf.mxu0
        %1797 = vmatprep.mubr.bf16.mxu0 0
        %1798 = vmatmul.mubr.bf16.gmra.mxu0 %v1755
        %v1799 = vpop.f32.mrf.mxu0
        %v1800 = vadd.f32 0.0, %v1799
        %v1801 = vpop.f32.mrf.mxu0
        %v1802 = vpop.f32.mrf.mxu0
        %v1803 = vadd.f32 0.0, %v1802
        %v1804 = vpop.f32.mrf.mxu0
        %1805 = vdwg.mxu0
        %v1806 = vadd.f32 %v1242, %v1792
        %v1807 = vadd.f32 %v1243, %v1795
        %v1808 = vadd.f32 %v1244, %v1800
        %v1809 = vadd.f32 %v1245, %v1803
        %1810 = vst [vmem:[%s247] sm:$0xff] %v1806
        %1811 = vst [vmem:[%s247 + $0x8] sm:$0xff] %v1807
        %1812 = vst [vmem:[%s247 + $0x10] sm:$0xff] %v1808
        %1813 = vst [vmem:[%s247 + $0x18] sm:$0xff] %v1809
        %s1814 = sand.u32 %s147, 1
        %s1815 = scalar_lea.sflag [#allocation3], %s1814
        %s1816 = sand.u32 %s147, 1
        %s1817 = smul.addr %s1816, 32
        %s1818 = scalar_lea.vmem [#allocation2], %s1817
        // Predicated region
        $region41: #{tpu_custom_call.1} parent=39 // pred_check
          %p1819 = pneg %p157
        $region42: #{tpu_custom_call.1} parent=39 // pred_check_branch
          %1821 = sbr.rel (%p1819) target = $region44
        $region43: #{tpu_custom_call.1} parent=39 // pred_region
          %s1823 = ssub.s32 512, 512
          %1824 = vsyncadd %s1815, %s1823
          %s1825 = smul.addr %s19, 4
          %s1826 = smul.addr %s1825, 128
          %s1827 = scalar_lea.hbm %s5, %s1826
          %s1828 = sshll.u32 %s1818, 4
          %s1829 = int_to_ptr.vmem [resolvable:$true] %s1828
          %1834 = dma.vmem_to_hbm [thread:$0]  %s1829, 512, %s1827, %s1815, 128, 128, 8
        $region44: #{tpu_custom_call.1} parent=39 // pred_fallthru
          _
      $region40: #{tpu_custom_call.1} parent=5 // pred_fallthru
        _
      %p1835 = scmp.le.s32.totalorder 2, %s14
      // Predicated region
      $region45: #{tpu_custom_call.1} parent=5 // pred_check
        %p1836 = pneg %p1835
      $region46: #{tpu_custom_call.1} parent=5 // pred_check_branch
        %1838 = sbr.rel (%p1836) target = $region48
      $region47: #{tpu_custom_call.1} parent=5 // pred_region
        %s1839 = ssub.s32 %s14, 2
        // Predicated region
        $region49: #{tpu_custom_call.1} parent=47 // pred_check
          %p1840 = pneg %p163
        $region50: #{tpu_custom_call.1} parent=47 // pred_check_branch
          %1842 = sbr.rel (%p1840) target = $region52
        $region51: #{tpu_custom_call.1} parent=47 // pred_region
          %s1843 = sand.u32 %s148, 1
          %s1844 = scalar_lea.sflag [#allocation3], %s1843
          %s1845 = sand.u32 %s148, 1
          %s1846 = smul.addr %s1845, 32
          %s1847 = scalar_lea.vmem [#allocation2], %s1846
          %1848 = dma.done %s1844, 512
        $region52: #{tpu_custom_call.1} parent=47 // pred_fallthru
          _
      $region48: #{tpu_custom_call.1} parent=5 // pred_fallthru
        _
    $region6: #{tpu_custom_call.1} parent=1 // loop_footer
      %s18 = sadd.s32 1, %s14
    $region7: #{tpu_custom_call.1} parent=1 // loop_footer_branch
      %13 = sbr.rel target = $region3
    $region8: #{tpu_custom_call.1} parent=1 // loop_exit
      _
    %1849 = vsyncpa [#allocation3], 1
    %s1850 = scalar_lea.sflag [#allocation3], 1
    %1851 = vsyncpa %s1850, 1

</llo_original>
